<compile_context>
chip_gen: v5e
topology: v5e:2x2
jax: 0.10.0
libtpu: 0.0.40
codegen_flags: <defaults>
</compile_context>

<pallas_src>
from functools import partial

import jax
import jax.numpy as jnp
from jax.experimental import pallas as pl
from jax.experimental.pallas import tpu as pltpu

CP = 128            # lane-dense channel padding (conv contraction / output channels)
NCP = 128           # lane-dense class padding
_SHIFT_ORDER = (1, 0, 2)   # center W-shift packed first so the residual sits at lanes [0, Cin)


# ----------------------------------------------------------------------------
# Fused forward kernel: conv3x3 + BN(eval) + residual + ReLU + global-avg-pool + FC
# ----------------------------------------------------------------------------
def _fused_block_kernel(x_ref, w_ref, scale_ref, bias_ref, fcw_ref, fcb_ref, o_ref,
                        *, h, w, inv_hw):
    # x_ref:      (1, H+2, W, CP) bf16  W-shifted taps packed on lanes (center shift first)
    # w_ref:      (3, CP, CP)     bf16  one (3*Cin -> Cout) lane-padded matrix per H tap
    # scale/bias: (1, CP)         f32   fused eval-mode BatchNorm affine
    # fcw_ref:    (CP, NCP) bf16, fcb_ref: (1, NCP) f32
    # o_ref:      (1, 1, NCP)     f32   per-batch logits
    cp = x_ref.shape[-1]
    rows = h * w

    # Conv as 3 H-shifted taps.  Slicing only the leading (non-vreg) axis and taking the
    # W axis whole means no sublane relayouts; bf16 operands feed the MXU at native rate
    # while accumulation stays f32.
    acc = jnp.zeros((rows, cp), jnp.float32)
    for di in range(3):
        tap = x_ref[0, di:di + h, :, :].reshape(rows, cp)          # bf16, relayout-free
        acc = acc + jnp.dot(tap, w_ref[di], preferred_element_type=jnp.float32)

    # Eval-mode BN + residual + ReLU in f32 vregs (v5e has no bf16 VPU).  The residual is
    # the center tap's first Cin lanes; lanes >= Cout may carry neighbour-pixel values,
    # but fc_w's padded rows are zero so they never reach the logits.
    y = acc * scale_ref[...] + bias_ref[...]
    res = x_ref[0, 1:1 + h, :, :].reshape(rows, cp).astype(jnp.float32)
    y = jnp.maximum(y + res, 0.0)

    pooled = jnp.sum(y, axis=0, keepdims=True) * inv_hw            # (1, CP) global avg pool
    logits = jnp.dot(pooled.astype(jnp.bfloat16), fcw_ref[...],
                     preferred_element_type=jnp.float32) + fcb_ref[...]
    # NOTE: a (1,1,128) block is a sublane-masked store; fine at B=2.  For large batches
    # switch to a (tb, NCP) output block to make the store sublane-dense as well.
    o_ref[0, :, :] = logits.astype(o_ref.dtype)


def _prepare_operands(params, buffers, eps=1e-5):
    """Pad / repack parameters once into lane-dense, MXU-ready (bf16) kernel operands."""
    c_out, c_in, kh, kw = params["conv_w"].shape
    nc = params["fc_w"].shape[1]
    assert (kh, kw) == (3, 3) and 3 * c_in <= CP and c_out <= CP and nc <= NCP
    # conv weight: (Co, Ci, 3, 3) -> per-H-tap (3*Ci -> Co) matrices matching the lane
    # packing order of the input (center W-shift first), lane-padded to (CP, CP).
    w = jnp.transpose(params["conv_w"].astype(jnp.float32), (2, 3, 1, 0))   # (kh, kw, Ci, Co)
    w = w[:, jnp.array(_SHIFT_ORDER), :, :]
    w = w.reshape(kh, kw * c_in, c_out)
    w = jnp.pad(w, ((0, 0), (0, CP - kw * c_in), (0, CP - c_out)))
    scale = params["bn_gamma"] / jnp.sqrt(buffers["bn_running_var"] + eps)
    bias = params["bn_beta"] - buffers["bn_running_mean"] * scale
    scale = jnp.pad(scale.astype(jnp.float32), (0, CP - c_out)).reshape(1, CP)
    bias = jnp.pad(bias.astype(jnp.float32), (0, CP - c_out)).reshape(1, CP)
    fc_w = jnp.pad(params["fc_w"].astype(jnp.float32), ((0, CP - c_out), (0, NCP - nc)))
    fc_b = jnp.pad(params["fc_b"].astype(jnp.float32), (0, NCP - nc)).reshape(1, NCP)
    return {"w": w.astype(jnp.bfloat16), "scale": scale, "bias": bias,
            "fc_w": fc_w.astype(jnp.bfloat16), "fc_b": fc_b,
            "c_in": c_in, "c_out": c_out, "nc": nc}


def fused_forward(x_nchw, ops):
    B, C, H, W = x_nchw.shape
    assert C == ops["c_in"] == ops["c_out"], "basic-block residual requires Cin == Cout"
    assert W % 8 == 0, "W should be a multiple of 8 (16 ideal for bf16) for relayout-free taps"
    # The whole halo'd image stays resident per batch element.  For large images (or on
    # v7x's 64 MiB VMEM) row-tile H with a 1-row halo + pool-accumulator grid axis instead.
    assert (H + 2) * W * CP * 2 * 2 < 16 * 1024 * 1024, "row-tile H for large images"

    x = jnp.transpose(x_nchw, (0, 2, 3, 1)).astype(jnp.float32)        # NCHW -> NHWC
    xpad = jnp.pad(x, ((0, 0), (1, 1), (1, 1), (0, 0)))                # 1-px spatial halo
    # Pack the three W-shifted copies into the lane axis (which is padded to 128 anyway):
    # removes every unaligned sublane slice from the kernel at zero extra HBM cost.
    xp = jnp.concatenate([xpad[:, :, s:s + W, :] for s in _SHIFT_ORDER], axis=-1)
    xp = jnp.pad(xp, ((0, 0), (0, 0), (0, 0), (0, CP - 3 * C))).astype(jnp.bfloat16)

    logits_p = pl.pallas_call(
        partial(_fused_block_kernel, h=H, w=W, inv_hw=1.0 / float(H * W)),
        out_shape=jax.ShapeDtypeStruct((B, 1, NCP), jnp.float32),
        grid=(B,),
        in_specs=[
            pl.BlockSpec((1, H + 2, W, CP), lambda b: (b, 0, 0, 0)),
            pl.BlockSpec((3, CP, CP), lambda b: (0, 0, 0)),
            pl.BlockSpec((1, CP), lambda b: (0, 0)),
            pl.BlockSpec((1, CP), lambda b: (0, 0)),
            pl.BlockSpec((CP, NCP), lambda b: (0, 0)),
            pl.BlockSpec((1, NCP), lambda b: (0, 0)),
        ],
        out_specs=pl.BlockSpec((1, 1, NCP), lambda b: (b, 0, 0)),
        compiler_params=pltpu.CompilerParams(dimension_semantics=("parallel",)),
    )(xp, ops["w"], ops["scale"], ops["bias"], ops["fc_w"], ops["fc_b"])
    return logits_p[:, 0, : ops["nc"]]


# ----------------------------------------------------------------------------
# EMA update kernel: tiled, lane-dense, in-place (aliased) elementwise lerp
# ----------------------------------------------------------------------------
def _ema_kernel(e_ref, m_ref, o_ref, *, one_minus_decay):
    e = e_ref[...]
    o_ref[...] = e + one_minus_decay * (m_ref[...] - e)


def ema_update_flat(ema_flat, model_flat, decay, tr):
    R, L = ema_flat.shape
    assert R % tr == 0
    return pl.pallas_call(
        partial(_ema_kernel, one_minus_decay=float(1.0 - decay)),
        out_shape=jax.ShapeDtypeStruct((R, L), ema_flat.dtype),
        grid=(R // tr,),
        in_specs=[pl.BlockSpec((tr, L), lambda i: (i, 0)),
                  pl.BlockSpec((tr, L), lambda i: (i, 0))],
        out_specs=pl.BlockSpec((tr, L), lambda i: (i, 0)),
        input_output_aliases={0: 0},      # in-place update of the persistent EMA buffer
        compiler_params=pltpu.CompilerParams(dimension_semantics=("parallel",)),
    )(ema_flat, model_flat)


# ----------------------------------------------------------------------------
# ModelEMA wrapper
# ----------------------------------------------------------------------------
class ModelEMA:
    """JAX/Pallas analogue of the PyTorch ModelEMA wrapper."""

    # ~2048*512*4B = 4 MB blocks: near HBM roofline for large models, still fine for tiny ones.
    _LANES = 2048
    _TR_MAX = 512

    def __init__(self, params, buffers, decay=0.9999):
        # deepcopy + eval()  ->  copy the pytrees; forward always uses eval-mode BN.
        params = jax.tree_util.tree_map(jnp.asarray, params)
        self.buffers = jax.tree_util.tree_map(jnp.asarray, buffers)
        self.decay = float(decay)
        leaves, self._treedef = jax.tree_util.tree_flatten(params)
        self._shapes = [v.shape for v in leaves]
        self._dtypes = [v.dtype for v in leaves]
        self._sizes = [int(v.size) for v in leaves]
        self._total = int(sum(self._sizes))
        rows = max(1, pl.cdiv(self._total, self._LANES))
        self._tr = min(self._TR_MAX, ((rows + 7) // 8) * 8)
        self._rows = ((rows + self._tr - 1) // self._tr) * self._tr
        # Persistent padded flat f32 EMA buffer (source of truth; f32 is required so the
        # (1-decay)*delta ~ 1e-4 steps don't vanish).
        self._flat = self._flatten_tree(params)
        self._params_cache = params
        self._ops_cache = None
        # TODO(synk): device= placement / state_dict / load_state_dict are framework
        # bookkeeping with no Pallas equivalent; handled as plain pytree copies.

    # -- parameter bookkeeping -------------------------------------------------
    def _flatten_tree(self, tree):
        leaves = jax.tree_util.tree_leaves(tree)
        flat = jnp.concatenate([jnp.ravel(v).astype(jnp.float32) for v in leaves])
        pad = self._rows * self._LANES - flat.size
        return jnp.pad(flat, (0, pad)).reshape(self._rows, self._LANES)

    @property
    def params(self):
        # Lazily re-materialize the structured pytree only when it is consumed.
        if self._params_cache is None:
            flat = self._flat.reshape(-1)[: self._total]
            leaves, off = [], 0
            for n, sh, dt in zip(self._sizes, self._shapes, self._dtypes):
                leaves.append(flat[off:off + n].reshape(sh).astype(dt))
                off += n
            self._params_cache = jax.tree_util.tree_unflatten(self._treedef, leaves)
        return self._params_cache

    def _operands(self):
        # Rebuilt lazily after an update.  (For large models, keep the EMA state directly
        # in padded operand layout per leaf and lerp it in place to skip this repack.)
        if self._ops_cache is None:
            self._ops_cache = _prepare_operands(self.params, self.buffers)
        return self._ops_cache

    # -- forward / EMA update ---------------------------------------------------
    def forward(self, x_nchw):
        return fused_forward(x_nchw, self._operands())

    __call__ = forward

    def update_parameters(self, model_params, model_buffers):
        assert jax.tree_util.tree_structure(model_params) == self._treedef, (
            "model / EMA pytree structure mismatch")
        # NOTE: for large models the live model should be mirrored in this flat layout by
        # the caller so this extra full read+write per update disappears.
        m_flat = self._flatten_tree(model_params)
        # ema <- ema + (1 - decay) * (model - ema), in place on the flat buffer.
        self._flat = ema_update_flat(self._flat, m_flat, self.decay, self._tr)
        self._params_cache = None
        self._ops_cache = None
        # buffers (BN running stats) are copied straight from the live model
        self.buffers = jax.tree_util.tree_map(jnp.asarray, model_buffers)


# ----------------------------------------------------------------------------
# Deterministic parameter init + reference + demo
# ----------------------------------------------------------------------------
def init_state(key, c_in=4, c_out=4, num_classes=10):
    ks = jax.random.split(key, 6)
    params = {
        "conv_w": 0.1 * jax.random.normal(ks[0], (c_out, c_in, 3, 3), jnp.float32),
        "bn_gamma": 1.0 + 0.1 * jax.random.normal(ks[1], (c_out,), jnp.float32),
        "bn_beta": 0.1 * jax.random.normal(ks[2], (c_out,), jnp.float32),
        "fc_w": 0.1 * jax.random.normal(ks[3], (c_out, num_classes), jnp.float32),
        "fc_b": 0.1 * jax.random.normal(ks[4], (num_classes,), jnp.float32),
    }
    buffers = {
        "bn_running_mean": 0.1 * jax.random.normal(ks[5], (c_out,), jnp.float32),
        "bn_running_var": jnp.ones((c_out,), jnp.float32),
    }
    return params, buffers


def reference_forward(x_nchw, params, buffers):
    x = jnp.transpose(x_nchw, (0, 2, 3, 1)).astype(jnp.float32)
    w_hwio = jnp.transpose(params["conv_w"], (2, 3, 1, 0))
    conv = jax.lax.conv_general_dilated(
        x, w_hwio, window_strides=(1, 1), padding="SAME",
        dimension_numbers=("NHWC", "HWIO", "NHWC"))
    eps = 1e-5
    scale = params["bn_gamma"] / jnp.sqrt(buffers["bn_running_var"] + eps)
    bias = params["bn_beta"] - buffers["bn_running_mean"] * scale
    y = jnp.maximum(conv * scale + bias + x, 0.0)
    pooled = jnp.mean(y, axis=(1, 2))
    return pooled @ params["fc_w"] + params["fc_b"]


if __name__ == "__main__":
    key = jax.random.PRNGKey(0)
    k_model, k_live, k_x = jax.random.split(key, 3)

    # "model" whose weights are tracked by the EMA copy
    live_params, live_buffers = init_state(k_live)
    # the EMA module starts as a deep copy of a deterministic base model
    base_params, base_buffers = init_state(k_model)
    ema = ModelEMA(base_params, base_buffers, decay=0.9999)

    x = jax.random.normal(k_x, (2, 4, 16, 16), jnp.float32)  # NCHW, like PyTorch

    # forward pass (single fused Pallas kernel, bf16 MXU operands / f32 accumulation)
    logits = jax.block_until_ready(ema(x))
    assert logits.shape == (2, 10)
    ref = reference_forward(x, ema.params, ema.buffers)
    # bf16 taps/weights round the inputs (~2^-9 relative), so compare at a bf16-appropriate
    # tolerance against the pure-f32 reference.
    assert jnp.allclose(logits, ref, atol=2e-3, rtol=2e-3), "forward mismatch vs reference"

    # EMA parameter update (tiled, aliased Pallas elementwise kernel, f32) + buffer copy
    ema.update_parameters(live_params, live_buffers)
    jax.block_until_ready(jax.tree_util.tree_leaves(ema.params))
    expected = jax.tree_util.tree_map(
        lambda e, m: 0.9999 * e + (1.0 - 0.9999) * m, base_params, live_params)
    ok = jax.tree_util.tree_all(jax.tree_util.tree_map(
        lambda a, b: jnp.allclose(a, b, atol=1e-5, rtol=1e-5), ema.params, expected))
    assert ok, "EMA update mismatch vs reference"

    # forward again with the updated EMA weights/buffers (exercises operand-cache rebuild)
    logits2 = jax.block_until_ready(ema(x))
    ref2 = reference_forward(x, ema.params, ema.buffers)
    assert jnp.allclose(logits2, ref2, atol=2e-3, rtol=2e-3), "post-update forward mismatch"

    print("KERNEL_OK")
</pallas_src>

<mosaic_0001>
module attributes {stable_mosaic.version = 11 : i64} {
  func.func @_fused_block_kernel(%arg0: i32, %arg1: memref<1x18x16x128xbf16, #tpu.memory_space<vmem>>, %arg2: memref<3x128x128xbf16, #tpu.memory_space<vmem>>, %arg3: memref<1x128xf32, #tpu.memory_space<vmem>>, %arg4: memref<1x128xf32, #tpu.memory_space<vmem>>, %arg5: memref<128x128xbf16, #tpu.memory_space<vmem>>, %arg6: memref<1x128xf32, #tpu.memory_space<vmem>>, %arg7: memref<1x1x128xf32, #tpu.memory_space<vmem>>) attributes {dimension_semantics = [#tpu.dimension_semantics<parallel>], iteration_bounds = array<i64: 2>, scalar_prefetch = 0 : i64, scratch_operands = 0 : i64, tpu.core_type = #tpu.core_type<tc>, window_params = [{transform_indices = @transform_0, window_bounds = array<i64: 1, 18, 16, 128>}, {pipeline_mode = #tpu.pipeline_mode<synchronous>, transform_indices = @transform_1, window_bounds = array<i64: 3, 128, 128>}, {pipeline_mode = #tpu.pipeline_mode<synchronous>, transform_indices = @transform_2, window_bounds = array<i64: 1, 128>}, {pipeline_mode = #tpu.pipeline_mode<synchronous>, transform_indices = @transform_3, window_bounds = array<i64: 1, 128>}, {pipeline_mode = #tpu.pipeline_mode<synchronous>, transform_indices = @transform_4, window_bounds = array<i64: 128, 128>}, {pipeline_mode = #tpu.pipeline_mode<synchronous>, transform_indices = @transform_5, window_bounds = array<i64: 1, 128>}, {transform_indices = @transform_6, window_bounds = array<i64: 1, 1, 128>}]} {
    %cst = arith.constant 0.000000e+00 : f32
    %0 = vector.broadcast %cst : f32 to vector<256x128xf32>
    %c0 = arith.constant 0 : index
    %c0_0 = arith.constant 0 : index
    %c0_1 = arith.constant 0 : index
    %c0_2 = arith.constant 0 : index
    %1 = vector.load %arg1[%c0, %c0_0, %c0_1, %c0_2] : memref<1x18x16x128xbf16, #tpu.memory_space<vmem>>, vector<1x16x16x128xbf16>
    %2 = vector.shape_cast %1 : vector<1x16x16x128xbf16> to vector<16x16x128xbf16>
    %3 = vector.shape_cast %2 : vector<16x16x128xbf16> to vector<256x128xbf16>
    %c0_3 = arith.constant 0 : index
    %c0_4 = arith.constant 0 : index
    %c0_5 = arith.constant 0 : index
    %4 = vector.load %arg2[%c0_3, %c0_4, %c0_5] : memref<3x128x128xbf16, #tpu.memory_space<vmem>>, vector<1x128x128xbf16>
    %5 = vector.shape_cast %4 : vector<1x128x128xbf16> to vector<128x128xbf16>
    %cst_6 = arith.constant dense<0.000000e+00> : vector<256x128xf32>
    %6 = tpu.matmul %3, %5, %cst_6 {dimension_numbers = #tpu.dot_dimension_numbers<[1], [0], [0], [1], [0, 0, 1, 1], [], []>} : vector<256x128xbf16>, vector<128x128xbf16>, vector<256x128xf32> -> vector<256x128xf32>
    %7 = arith.addf %0, %6 : vector<256x128xf32>
    %c0_7 = arith.constant 0 : index
    %c1 = arith.constant 1 : index
    %c0_8 = arith.constant 0 : index
    %c0_9 = arith.constant 0 : index
    %8 = vector.load %arg1[%c0_7, %c1, %c0_8, %c0_9] : memref<1x18x16x128xbf16, #tpu.memory_space<vmem>>, vector<1x16x16x128xbf16>
    %9 = vector.shape_cast %8 : vector<1x16x16x128xbf16> to vector<16x16x128xbf16>
    %10 = vector.shape_cast %9 : vector<16x16x128xbf16> to vector<256x128xbf16>
    %c1_10 = arith.constant 1 : index
    %c0_11 = arith.constant 0 : index
    %c0_12 = arith.constant 0 : index
    %11 = vector.load %arg2[%c1_10, %c0_11, %c0_12] : memref<3x128x128xbf16, #tpu.memory_space<vmem>>, vector<1x128x128xbf16>
    %12 = vector.shape_cast %11 : vector<1x128x128xbf16> to vector<128x128xbf16>
    %cst_13 = arith.constant dense<0.000000e+00> : vector<256x128xf32>
    %13 = tpu.matmul %10, %12, %cst_13 {dimension_numbers = #tpu.dot_dimension_numbers<[1], [0], [0], [1], [0, 0, 1, 1], [], []>} : vector<256x128xbf16>, vector<128x128xbf16>, vector<256x128xf32> -> vector<256x128xf32>
    %14 = arith.addf %7, %13 : vector<256x128xf32>
    %c0_14 = arith.constant 0 : index
    %c2 = arith.constant 2 : index
    %c0_15 = arith.constant 0 : index
    %c0_16 = arith.constant 0 : index
    %15 = vector.load %arg1[%c0_14, %c2, %c0_15, %c0_16] : memref<1x18x16x128xbf16, #tpu.memory_space<vmem>>, vector<1x16x16x128xbf16>
    %16 = vector.shape_cast %15 : vector<1x16x16x128xbf16> to vector<16x16x128xbf16>
    %17 = vector.shape_cast %16 : vector<16x16x128xbf16> to vector<256x128xbf16>
    %c2_17 = arith.constant 2 : index
    %c0_18 = arith.constant 0 : index
    %c0_19 = arith.constant 0 : index
    %18 = vector.load %arg2[%c2_17, %c0_18, %c0_19] : memref<3x128x128xbf16, #tpu.memory_space<vmem>>, vector<1x128x128xbf16>
    %19 = vector.shape_cast %18 : vector<1x128x128xbf16> to vector<128x128xbf16>
    %cst_20 = arith.constant dense<0.000000e+00> : vector<256x128xf32>
    %20 = tpu.matmul %17, %19, %cst_20 {dimension_numbers = #tpu.dot_dimension_numbers<[1], [0], [0], [1], [0, 0, 1, 1], [], []>} : vector<256x128xbf16>, vector<128x128xbf16>, vector<256x128xf32> -> vector<256x128xf32>
    %21 = arith.addf %14, %20 : vector<256x128xf32>
    %c0_21 = arith.constant 0 : index
    %c0_22 = arith.constant 0 : index
    %22 = vector.load %arg3[%c0_21, %c0_22] : memref<1x128xf32, #tpu.memory_space<vmem>>, vector<1x128xf32>
    %23 = vector.broadcast %22 : vector<1x128xf32> to vector<256x128xf32>
    %24 = arith.mulf %21, %23 : vector<256x128xf32>
    %c0_23 = arith.constant 0 : index
    %c0_24 = arith.constant 0 : index
    %25 = vector.load %arg4[%c0_23, %c0_24] : memref<1x128xf32, #tpu.memory_space<vmem>>, vector<1x128xf32>
    %26 = vector.broadcast %25 : vector<1x128xf32> to vector<256x128xf32>
    %27 = arith.addf %24, %26 : vector<256x128xf32>
    %c0_25 = arith.constant 0 : index
    %c1_26 = arith.constant 1 : index
    %c0_27 = arith.constant 0 : index
    %c0_28 = arith.constant 0 : index
    %28 = vector.load %arg1[%c0_25, %c1_26, %c0_27, %c0_28] : memref<1x18x16x128xbf16, #tpu.memory_space<vmem>>, vector<1x16x16x128xbf16>
    %29 = vector.shape_cast %28 : vector<1x16x16x128xbf16> to vector<16x16x128xbf16>
    %30 = vector.shape_cast %29 : vector<16x16x128xbf16> to vector<256x128xbf16>
    %31 = arith.extf %30 : vector<256x128xbf16> to vector<256x128xf32>
    %32 = arith.addf %27, %31 : vector<256x128xf32>
    %cst_29 = arith.constant 0.000000e+00 : f32
    %33 = vector.broadcast %cst_29 : f32 to vector<256x128xf32>
    %34 = arith.maximumf %32, %33 : vector<256x128xf32>
    %cst_30 = arith.constant dense<0.000000e+00> : vector<128xf32>
    %35 = vector.multi_reduction <add>, %34, %cst_30 [0] : vector<256x128xf32> to vector<128xf32>
    %36 = vector.shape_cast %35 : vector<128xf32> to vector<1x128xf32>
    %cst_31 = arith.constant 3.906250e-03 : f32
    %37 = vector.broadcast %cst_31 : f32 to vector<1x128xf32>
    %38 = arith.mulf %36, %37 : vector<1x128xf32>
    %39 = arith.truncf %38 : vector<1x128xf32> to vector<1x128xbf16>
    %c0_32 = arith.constant 0 : index
    %c0_33 = arith.constant 0 : index
    %40 = vector.load %arg5[%c0_32, %c0_33] : memref<128x128xbf16, #tpu.memory_space<vmem>>, vector<128x128xbf16>
    %cst_34 = arith.constant dense<0.000000e+00> : vector<1x128xf32>
    %41 = tpu.matmul %39, %40, %cst_34 {dimension_numbers = #tpu.dot_dimension_numbers<[1], [0], [0], [1], [0, 0, 1, 1], [], []>} : vector<1x128xbf16>, vector<128x128xbf16>, vector<1x128xf32> -> vector<1x128xf32>
    %c0_35 = arith.constant 0 : index
    %c0_36 = arith.constant 0 : index
    %42 = vector.load %arg6[%c0_35, %c0_36] : memref<1x128xf32, #tpu.memory_space<vmem>>, vector<1x128xf32>
    %43 = arith.addf %41, %42 : vector<1x128xf32>
    %c0_37 = arith.constant 0 : index
    %c0_38 = arith.constant 0 : index
    %c0_39 = arith.constant 0 : index
    %44 = vector.load %arg7[%c0_37, %c0_38, %c0_39] : memref<1x1x128xf32, #tpu.memory_space<vmem>>, vector<1x1x128xf32>
    %45 = vector.shape_cast %44 : vector<1x1x128xf32> to vector<1x128xf32>
    %46 = vector.shape_cast %43 : vector<1x128xf32> to vector<1x1x128xf32>
    tpu.vector_store %arg7[%c0_37, %c0_38, %c0_39], %46 {strides = array<i32>} : memref<1x1x128xf32, #tpu.memory_space<vmem>>, vector<1x1x128xf32>,
    return
  }
  func.func @transform_0(%arg0: i32) -> (i32, i32, i32, i32) {
    %c0_i32 = arith.constant 0 : i32
    %c0_i32_0 = arith.constant 0 : i32
    %c0_i32_1 = arith.constant 0 : i32
    %c0_i32_2 = arith.constant 0 : i32
    return %arg0, %c0_i32, %c0_i32_0, %c0_i32_1 : i32, i32, i32, i32
  }
  func.func @transform_1(%arg0: i32) -> (i32, i32, i32) {
    %c0_i32 = arith.constant 0 : i32
    %c0_i32_0 = arith.constant 0 : i32
    %c0_i32_1 = arith.constant 0 : i32
    %c0_i32_2 = arith.constant 0 : i32
    return %c0_i32, %c0_i32_0, %c0_i32_1 : i32, i32, i32
  }
  func.func @transform_2(%arg0: i32) -> (i32, i32) {
    %c0_i32 = arith.constant 0 : i32
    %c0_i32_0 = arith.constant 0 : i32
    %c0_i32_1 = arith.constant 0 : i32
    return %c0_i32, %c0_i32_0 : i32, i32
  }
  func.func @transform_3(%arg0: i32) -> (i32, i32) {
    %c0_i32 = arith.constant 0 : i32
    %c0_i32_0 = arith.constant 0 : i32
    %c0_i32_1 = arith.constant 0 : i32
    return %c0_i32, %c0_i32_0 : i32, i32
  }
  func.func @transform_4(%arg0: i32) -> (i32, i32) {
    %c0_i32 = arith.constant 0 : i32
    %c0_i32_0 = arith.constant 0 : i32
    %c0_i32_1 = arith.constant 0 : i32
    return %c0_i32, %c0_i32_0 : i32, i32
  }
  func.func @transform_5(%arg0: i32) -> (i32, i32) {
    %c0_i32 = arith.constant 0 : i32
    %c0_i32_0 = arith.constant 0 : i32
    %c0_i32_1 = arith.constant 0 : i32
    return %c0_i32, %c0_i32_0 : i32, i32
  }
  func.func @transform_6(%arg0: i32) -> (i32, i32, i32) {
    %c0_i32 = arith.constant 0 : i32
    %c0_i32_0 = arith.constant 0 : i32
    %c0_i32_1 = arith.constant 0 : i32
    return %arg0, %c0_i32, %c0_i32_0 : i32, i32, i32
  }
}

</mosaic_0001>

<llo_original>
// kernel: tpu_custom_call.1
$region0: #{tpu_custom_call.1}
  #allocation0 [shape = 'u32[]', space=smem, size = 0x4, offset = 0x4, fixed_abs, tag = 'smem constant byte address 0x4 - core index']
  #allocation1 [shape = 'u32[72,128]{1,0:T(1,128)}', space=vmem, size = 0x9000, scoped, tag = 'internal scratch']
  %s0 = inlined_call_operand.hbm [shape: bf16[2,18,16,128], index: 0, kind: input, shape index: {}]
  %s1 = inlined_call_operand.hbm [shape: bf16[3,128,128], index: 1, kind: input, shape index: {}]
  %s2 = inlined_call_operand.vmem [shape: f32[1,128], index: 2, kind: input, shape index: {}]
  %s3 = inlined_call_operand.vmem [shape: f32[1,128], index: 3, kind: input, shape index: {}]
  %s4 = inlined_call_operand.hbm [shape: bf16[128,128], index: 4, kind: input, shape index: {}]
  %s5 = inlined_call_operand.vmem [shape: f32[1,128], index: 5, kind: input, shape index: {}]
  %s6 = inlined_call_operand.hbm [shape: f32[2,1,128], index: 6, kind: output, shape index: {}]
  %s7 = sld [smem:[#allocation0]]
  $region69: #{tpu_custom_call.1} parent=0
    _
  %s9 = ssub.s32 1, %s7
  %s10 = scalar_select 0, %s9, %s7
  $region1: #{tpu_custom_call.1} parent=0
    #allocation2 [shape = 'u8[147456]{0}', space=vmem, size = 0x24000, scoped, tag = 'input window, operand 0']
    #allocation3 [shape = 's32[2]{0}', space=sflag, size = 0x8, scoped, tag = 'scoped memory for tpu_custom_call.1']
    #allocation4 [shape = 's32[2]{0}', space=sflag, size = 0x8, scoped, tag = 'scoped memory for tpu_custom_call.1']
    #allocation5 [shape = 'u8[98304]{0}', space=vmem, size = 0x18000, scoped, tag = 'input window, operand 1, single buffered']
    #allocation6 [shape = 's32[1]{0}', space=sflag, size = 0x4, scoped, tag = 'scoped memory for tpu_custom_call.1']
    #allocation7 [shape = 'u8[32768]{0}', space=vmem, size = 0x8000, scoped, tag = 'input window, operand 4, single buffered']
    #allocation8 [shape = 'u8[1024]{0}', space=vmem, size = 0x400, scoped, tag = 'output window, operand 0']
    %11 = vsyncpa [#allocation3], 0
    %s12 = scalar_lea.sflag [#allocation3], 1
    %13 = vsyncpa %s12, 0
    %14 = vsyncpa [#allocation6], 0
    %15 = vsyncpa [#allocation4], 0
    %s16 = scalar_lea.sflag [#allocation4], 1
    %17 = vsyncpa %s16, 0
    loop: start=0, step=1, limit=4
    $region2: #{tpu_custom_call.1} parent=1 // loop_pre_header
      _
    $region3: #{tpu_custom_call.1} parent=1 // loop_header
      %s19 = sphi 0, %s23
      %p20 = scmp.ge.s32.totalorder %s19, 4
      %s29 = sphi 0, %s31
      %s32 = sphi 0, %s29
      %s33 = sphi 0, %s32
      %s49 = sphi 0, %s33
      %s53 = sphi 0, %s53
      %s55 = sphi 0, %s53
      %s56 = sphi 0, %s55
      %s70 = sphi 0, %s56
      %s74 = sphi 0, %s74
      %s76 = sphi 0, %s74
      %s77 = sphi 0, %s76
      %s91 = sphi 0, %s77
      %s95 = sphi 0, %s95
      %s97 = sphi 0, %s95
      %s98 = sphi 0, %s97
      %s112 = sphi 0, %s98
      %s116 = sphi 0, %s116
      %s118 = sphi 0, %s116
      %s119 = sphi 0, %s118
      %s133 = sphi 0, %s119
      %s137 = sphi 0, %s137
      %s139 = sphi 0, %s137
      %s140 = sphi 0, %s139
      %s154 = sphi 0, %s140
      %s160 = sphi 0, %s162
      %s163 = sphi 0, %s160
      %s164 = sphi 0, %s163
      %s180 = sphi 0, %s164
    $region4: #{tpu_custom_call.1} parent=1 // loop_header_branch
      %22 = sbr.rel (%p20) target = $region8
    $region5: #{tpu_custom_call.1} parent=1 // loop_body
      %s24 = ssub.s32 %s19, 1
      %s25 = ssub.s32 %s19, 2
      %s26 = sadd.s32 %s19, 1
      %s27 = ssub.s32 %s19, %s26
      %p28 = scmp.eq.s32.totalorder %s27, 0
      %s30 = sadd.s32 %s29, 1
      %s31 = scalar_select %p28, %s29, %s30
      %p34 = pneg %p28
      %p35 = scmp.eq.s32.totalorder %s19, 1
      %p36 = por %p34, %p35
      %p37 = scmp.ne.s32.totalorder %s29, %s32
      %p38 = scmp.eq.s32.totalorder %s19, 0
      %p39 = por %p37, %p38
      %p40 = scmp.ne.s32.totalorder %s29, %s32
      %p41 = scmp.eq.s32.totalorder %s24, 1
      %p42 = por %p40, %p41
      %p43 = scmp.ne.s32.totalorder %s32, %s33
      %p44 = scmp.eq.s32.totalorder %s24, 0
      %p45 = por %p43, %p44
      %p46 = scmp.ne.s32.totalorder %s32, %s33
      %p47 = scmp.eq.s32.totalorder %s25, 1
      %p48 = por %p46, %p47
      %p50 = scmp.ne.s32.totalorder %s33, %s49
      %p51 = scmp.eq.s32.totalorder %s25, 0
      %p52 = por %p50, %p51
      %s54 = sadd.s32 %s53, 1
      %p57 = scmp.eq.s32.totalorder %s19, 1
      %p58 = scmp.ne.s32.totalorder %s53, %s55
      %p59 = scmp.eq.s32.totalorder %s19, 0
      %p60 = por %p58, %p59
      %p61 = scmp.ne.s32.totalorder %s53, %s55
      %p62 = scmp.eq.s32.totalorder %s24, 1
      %p63 = por %p61, %p62
      %p64 = scmp.ne.s32.totalorder %s55, %s56
      %p65 = scmp.eq.s32.totalorder %s24, 0
      %p66 = por %p64, %p65
      %p67 = scmp.ne.s32.totalorder %s55, %s56
      %p68 = scmp.eq.s32.totalorder %s25, 1
      %p69 = por %p67, %p68
      %p71 = scmp.ne.s32.totalorder %s56, %s70
      %p72 = scmp.eq.s32.totalorder %s25, 0
      %p73 = por %p71, %p72
      %s75 = sadd.s32 %s74, 1
      %p78 = scmp.eq.s32.totalorder %s19, 1
      %p79 = scmp.ne.s32.totalorder %s74, %s76
      %p80 = scmp.eq.s32.totalorder %s19, 0
      %p81 = por %p79, %p80
      %p82 = scmp.ne.s32.totalorder %s74, %s76
      %p83 = scmp.eq.s32.totalorder %s24, 1
      %p84 = por %p82, %p83
      %p85 = scmp.ne.s32.totalorder %s76, %s77
      %p86 = scmp.eq.s32.totalorder %s24, 0
      %p87 = por %p85, %p86
      %p88 = scmp.ne.s32.totalorder %s76, %s77
      %p89 = scmp.eq.s32.totalorder %s25, 1
      %p90 = por %p88, %p89
      %p92 = scmp.ne.s32.totalorder %s77, %s91
      %p93 = scmp.eq.s32.totalorder %s25, 0
      %p94 = por %p92, %p93
      %s96 = sadd.s32 %s95, 1
      %p99 = scmp.eq.s32.totalorder %s19, 1
      %p100 = scmp.ne.s32.totalorder %s95, %s97
      %p101 = scmp.eq.s32.totalorder %s19, 0
      %p102 = por %p100, %p101
      %p103 = scmp.ne.s32.totalorder %s95, %s97
      %p104 = scmp.eq.s32.totalorder %s24, 1
      %p105 = por %p103, %p104
      %p106 = scmp.ne.s32.totalorder %s97, %s98
      %p107 = scmp.eq.s32.totalorder %s24, 0
      %p108 = por %p106, %p107
      %p109 = scmp.ne.s32.totalorder %s97, %s98
      %p110 = scmp.eq.s32.totalorder %s25, 1
      %p111 = por %p109, %p110
      %p113 = scmp.ne.s32.totalorder %s98, %s112
      %p114 = scmp.eq.s32.totalorder %s25, 0
      %p115 = por %p113, %p114
      %s117 = sadd.s32 %s116, 1
      %p120 = scmp.eq.s32.totalorder %s19, 1
      %p121 = scmp.ne.s32.totalorder %s116, %s118
      %p122 = scmp.eq.s32.totalorder %s19, 0
      %p123 = por %p121, %p122
      %p124 = scmp.ne.s32.totalorder %s116, %s118
      %p125 = scmp.eq.s32.totalorder %s24, 1
      %p126 = por %p124, %p125
      %p127 = scmp.ne.s32.totalorder %s118, %s119
      %p128 = scmp.eq.s32.totalorder %s24, 0
      %p129 = por %p127, %p128
      %p130 = scmp.ne.s32.totalorder %s118, %s119
      %p131 = scmp.eq.s32.totalorder %s25, 1
      %p132 = por %p130, %p131
      %p134 = scmp.ne.s32.totalorder %s119, %s133
      %p135 = scmp.eq.s32.totalorder %s25, 0
      %p136 = por %p134, %p135
      %s138 = sadd.s32 %s137, 1
      %p141 = scmp.eq.s32.totalorder %s19, 1
      %p142 = scmp.ne.s32.totalorder %s137, %s139
      %p143 = scmp.eq.s32.totalorder %s19, 0
      %p144 = por %p142, %p143
      %p145 = scmp.ne.s32.totalorder %s137, %s139
      %p146 = scmp.eq.s32.totalorder %s24, 1
      %p147 = por %p145, %p146
      %p148 = scmp.ne.s32.totalorder %s139, %s140
      %p149 = scmp.eq.s32.totalorder %s24, 0
      %p150 = por %p148, %p149
      %p151 = scmp.ne.s32.totalorder %s139, %s140
      %p152 = scmp.eq.s32.totalorder %s25, 1
      %p153 = por %p151, %p152
      %p155 = scmp.ne.s32.totalorder %s140, %s154
      %p156 = scmp.eq.s32.totalorder %s25, 0
      %p157 = por %p155, %p156
      %s158 = ssub.s32 %s19, %s26
      %p159 = scmp.eq.s32.totalorder %s158, 0
      %s161 = sadd.s32 %s160, 1
      %s162 = scalar_select %p159, %s160, %s161
      %p165 = pneg %p159
      %p166 = scmp.eq.s32.totalorder %s19, 1
      %p167 = por %p165, %p166
      %p168 = scmp.ne.s32.totalorder %s160, %s163
      %p169 = scmp.eq.s32.totalorder %s19, 0
      %p170 = por %p168, %p169
      %p171 = scmp.ne.s32.totalorder %s160, %s163
      %p172 = scmp.eq.s32.totalorder %s24, 1
      %p173 = por %p171, %p172
      %p174 = scmp.ne.s32.totalorder %s163, %s164
      %p175 = scmp.eq.s32.totalorder %s24, 0
      %p176 = por %p174, %p175
      %p177 = scmp.ne.s32.totalorder %s163, %s164
      %p178 = scmp.eq.s32.totalorder %s25, 1
      %p179 = por %p177, %p178
      %p181 = scmp.ne.s32.totalorder %s164, %s180
      %p182 = scmp.eq.s32.totalorder %s25, 0
      %p183 = por %p181, %p182
      %p184 = scmp.le.s32.totalorder 1, %s19
      %p185 = scmp.lt.s32.totalorder %s19, 3
      %p186 = pnand %p184, %p185
      %p187 = pneg %p186
      // Predicated region
      $region9: #{tpu_custom_call.1} parent=5 // pred_check
        _
      $region10: #{tpu_custom_call.1} parent=5 // pred_check_branch
        %189 = sbr.rel (%p186) target = $region12
      $region11: #{tpu_custom_call.1} parent=5 // pred_region
        %s190 = ssub.s32 %s19, 1
        // Predicated region
        $region13: #{tpu_custom_call.1} parent=11 // pred_check
          %p191 = pneg %p66
        $region14: #{tpu_custom_call.1} parent=11 // pred_check_branch
          %193 = sbr.rel (%p191) target = $region16
        $region15: #{tpu_custom_call.1} parent=11 // pred_region
          %195 = vsyncadd [#allocation6], 0
          %s196 = sshll.u32 %s1, 4
          %s197 = int_to_ptr.hbm [resolvable:$true] %s196
          %s198 = sshll.u32 [#allocation5], 4
          %s199 = int_to_ptr.vmem [resolvable:$true] %s198
          %204 = dma.hbm_to_vmem [thread:$0]  %s197, 3072, %s199, [#allocation6], 64, 64, 4
        $region16: #{tpu_custom_call.1} parent=11 // pred_fallthru
          _
        // Predicated region
        $region17: #{tpu_custom_call.1} parent=11 // pred_check
          %p205 = pneg %p87
        $region18: #{tpu_custom_call.1} parent=11 // pred_check_branch
          %207 = sbr.rel (%p205) target = $region20
        $region19: #{tpu_custom_call.1} parent=11 // pred_region
          _
        $region20: #{tpu_custom_call.1} parent=11 // pred_fallthru
          _
        // Predicated region
        $region21: #{tpu_custom_call.1} parent=11 // pred_check
          %p208 = pneg %p108
        $region22: #{tpu_custom_call.1} parent=11 // pred_check_branch
          %210 = sbr.rel (%p208) target = $region24
        $region23: #{tpu_custom_call.1} parent=11 // pred_region
          _
        $region24: #{tpu_custom_call.1} parent=11 // pred_fallthru
          _
        // Predicated region
        $region25: #{tpu_custom_call.1} parent=11 // pred_check
          %p211 = pneg %p129
        $region26: #{tpu_custom_call.1} parent=11 // pred_check_branch
          %213 = sbr.rel (%p211) target = $region28
        $region27: #{tpu_custom_call.1} parent=11 // pred_region
          %215 = vsyncadd [#allocation6], 0
          %s216 = sshll.u32 %s4, 4
          %s217 = int_to_ptr.hbm [resolvable:$true] %s216
          %s218 = sshll.u32 [#allocation7], 4
          %s219 = int_to_ptr.vmem [resolvable:$true] %s218
          %224 = dma.hbm_to_vmem [thread:$0]  %s217, 1024, %s219, [#allocation6], 64, 64, 4
        $region28: #{tpu_custom_call.1} parent=11 // pred_fallthru
          _
        // Predicated region
        $region29: #{tpu_custom_call.1} parent=11 // pred_check
          %p225 = pneg %p150
        $region30: #{tpu_custom_call.1} parent=11 // pred_check_branch
          %227 = sbr.rel (%p225) target = $region32
        $region31: #{tpu_custom_call.1} parent=11 // pred_region
          _
        $region32: #{tpu_custom_call.1} parent=11 // pred_fallthru
          _
      $region12: #{tpu_custom_call.1} parent=5 // pred_fallthru
        _
      %p228 = scmp.lt.s32.totalorder %s19, 2
      // Predicated region
      $region33: #{tpu_custom_call.1} parent=5 // pred_check
        %p229 = pneg %p228
      $region34: #{tpu_custom_call.1} parent=5 // pred_check_branch
        %231 = sbr.rel (%p229) target = $region36
      $region35: #{tpu_custom_call.1} parent=5 // pred_region
        // Predicated region
        $region37: #{tpu_custom_call.1} parent=35 // pred_check
          %p232 = pneg %p39
        $region38: #{tpu_custom_call.1} parent=35 // pred_check_branch
          %234 = sbr.rel (%p232) target = $region40
        $region39: #{tpu_custom_call.1} parent=35 // pred_region
          %s235 = sand.u32 %s29, 1
          %s236 = scalar_lea.sflag [#allocation3], %s235
          %s237 = sand.u32 %s29, 1
          %s238 = smul.addr %s237, 144
          %s239 = scalar_lea.vmem [#allocation2], %s238
          %241 = vsyncadd %s236, 0
          %s242 = smul.addr %s19, 36
          %s243 = smul.addr %s242, 4
          %s244 = scalar_lea.hbm %s0, %s243
          %s245 = sshll.u32 %s244, 4
          %s246 = int_to_ptr.hbm [resolvable:$true] %s245
          %s247 = sshll.u32 %s239, 4
          %s248 = int_to_ptr.vmem [resolvable:$true] %s247
          %253 = dma.hbm_to_vmem [thread:$0]  %s246, 2304, %s248, %s236, 64, 64, 4
        $region40: #{tpu_custom_call.1} parent=35 // pred_fallthru
          _
      $region36: #{tpu_custom_call.1} parent=5 // pred_fallthru
        _
      %p254 = scmp.le.s32.totalorder 1, %s19
      %p255 = scmp.lt.s32.totalorder %s19, 3
      %p256 = pnand %p254, %p255
      %p257 = pneg %p256
      // Predicated region
      $region41: #{tpu_custom_call.1} parent=5 // pred_check
        _
      $region42: #{tpu_custom_call.1} parent=5 // pred_check_branch
        %259 = sbr.rel (%p256) target = $region44
      $region43: #{tpu_custom_call.1} parent=5 // pred_region
        %s260 = ssub.s32 %s19, 1
        %s261 = sand.u32 %s32, 1
        %s262 = scalar_lea.sflag [#allocation3], %s261
        %s263 = sand.u32 %s32, 1
        %s264 = smul.addr %s263, 144
        %s265 = scalar_lea.vmem [#allocation2], %s264
        // Predicated region
        $region45: #{tpu_custom_call.1} parent=43 // pred_check
          %p266 = pneg %p45
        $region46: #{tpu_custom_call.1} parent=43 // pred_check_branch
          %268 = sbr.rel (%p266) target = $region48
        $region47: #{tpu_custom_call.1} parent=43 // pred_region
          %270 = dma.done %s262, 2304
        $region48: #{tpu_custom_call.1} parent=43 // pred_fallthru
          _
        // Predicated region
        $region49: #{tpu_custom_call.1} parent=43 // pred_check
          %p271 = pneg %p66
        $region50: #{tpu_custom_call.1} parent=43 // pred_check_branch
          %273 = sbr.rel (%p271) target = $region52
        $region51: #{tpu_custom_call.1} parent=43 // pred_region
          %275 = dma.done [#allocation6], 3072
        $region52: #{tpu_custom_call.1} parent=43 // pred_fallthru
          _
        // Predicated region
        $region53: #{tpu_custom_call.1} parent=43 // pred_check
          %p276 = pneg %p129
        $region54: #{tpu_custom_call.1} parent=43 // pred_check_branch
          %278 = sbr.rel (%p276) target = $region56
        $region55: #{tpu_custom_call.1} parent=43 // pred_region
          %280 = dma.done [#allocation6], 1024
        $region56: #{tpu_custom_call.1} parent=43 // pred_fallthru
          _
        %s281 = sand.u32 %s32, 1
        %s282 = scalar_lea.sflag [#allocation3], %s281
        %s283 = sand.u32 %s32, 1
        %s284 = smul.addr %s283, 144
        %s285 = scalar_lea.vmem [#allocation2], %s284
        %p286 = pneg %p45
        %p287 = pneg %p42
        %p288 = pneg %p66
        %p289 = pneg %p63
        %p290 = pneg %p87
        %p291 = pneg %p84
        %p292 = pneg %p108
        %p293 = pneg %p105
        %p294 = pneg %p129
        %p295 = pneg %p126
        %p296 = pneg %p150
        %p297 = pneg %p147
        %p298 = pneg %p176
        %p299 = pneg %p173
        %s300 = sand.u32 %s163, 1
        %s301 = scalar_lea.sflag [#allocation4], %s300
        %s302 = sand.u32 %s163, 1
        %s303 = scalar_lea.vmem [#allocation8], %s302
        %v304 = vld [vmem:[%s265] sm:$0xf]
        %v305 = vld [vmem:[%s265 + $0x4] sm:$0xf]
        %v306 = vld [vmem:[%s265 + $0x8] sm:$0xf]
        %v307 = vld [vmem:[%s265 + $0xc] sm:$0xf]
        %v308 = vld [vmem:[%s265 + $0x10] sm:$0xf]
        %v309 = vld [vmem:[%s265 + $0x14] sm:$0xf]
        %v310 = vld [vmem:[%s265 + $0x18] sm:$0xf]
        %v311 = vld [vmem:[%s265 + $0x1c] sm:$0xf]
        %v312 = vld [vmem:[%s265 + $0x20] sm:$0xf]
        %v313 = vld [vmem:[%s265 + $0x24] sm:$0xf]
        %v314 = vld [vmem:[%s265 + $0x28] sm:$0xf]
        %v315 = vld [vmem:[%s265 + $0x2c] sm:$0xf]
        %v316 = vld [vmem:[%s265 + $0x30] sm:$0xf]
        %v317 = vld [vmem:[%s265 + $0x34] sm:$0xf]
        %v318 = vld [vmem:[%s265 + $0x38] sm:$0xf]
        %v319 = vld [vmem:[%s265 + $0x3c] sm:$0xf]
        %v320 = vld [vmem:[%s265 + $0x40] sm:$0xf]
        %v321 = vld [vmem:[%s265 + $0x44] sm:$0xf]
        %v322 = vld [vmem:[%s265 + $0x48] sm:$0xf]
        %v323 = vld [vmem:[%s265 + $0x4c] sm:$0xf]
        %v324 = vld [vmem:[%s265 + $0x50] sm:$0xf]
        %v325 = vld [vmem:[%s265 + $0x54] sm:$0xf]
        %v326 = vld [vmem:[%s265 + $0x58] sm:$0xf]
        %v327 = vld [vmem:[%s265 + $0x5c] sm:$0xf]
        %v328 = vld [vmem:[%s265 + $0x60] sm:$0xf]
        %v329 = vld [vmem:[%s265 + $0x64] sm:$0xf]
        %v330 = vld [vmem:[%s265 + $0x68] sm:$0xf]
        %v331 = vld [vmem:[%s265 + $0x6c] sm:$0xf]
        %v332 = vld [vmem:[%s265 + $0x70] sm:$0xf]
        %v333 = vld [vmem:[%s265 + $0x74] sm:$0xf]
        %v334 = vld [vmem:[%s265 + $0x78] sm:$0xf]
        %v335 = vld [vmem:[%s265 + $0x7c] sm:$0xf]
        %v336 = vld [vmem:[#allocation5] sm:$0xf]
        %v337 = vld [vmem:[#allocation5 + $0x4] sm:$0xf]
        %v338 = vld [vmem:[#allocation5 + $0x8] sm:$0xf]
        %v339 = vld [vmem:[#allocation5 + $0xc] sm:$0xf]
        %v340 = vld [vmem:[#allocation5 + $0x10] sm:$0xf]
        %v341 = vld [vmem:[#allocation5 + $0x14] sm:$0xf]
        %v342 = vld [vmem:[#allocation5 + $0x18] sm:$0xf]
        %v343 = vld [vmem:[#allocation5 + $0x1c] sm:$0xf]
        %v344 = vld [vmem:[#allocation5 + $0x20] sm:$0xf]
        %v345 = vld [vmem:[#allocation5 + $0x24] sm:$0xf]
        %v346 = vld [vmem:[#allocation5 + $0x28] sm:$0xf]
        %v347 = vld [vmem:[#allocation5 + $0x2c] sm:$0xf]
        %v348 = vld [vmem:[#allocation5 + $0x30] sm:$0xf]
        %v349 = vld [vmem:[#allocation5 + $0x34] sm:$0xf]
        %v350 = vld [vmem:[#allocation5 + $0x38] sm:$0xf]
        %v351 = vld [vmem:[#allocation5 + $0x3c] sm:$0xf]
        %s352 = scalar_lea.vmem %s265, 8 [#allocation2]
        %v353 = vld [vmem:[%s352] sm:$0xf]
        %v354 = vld [vmem:[%s352 + $0x4] sm:$0xf]
        %v355 = vld [vmem:[%s352 + $0x8] sm:$0xf]
        %v356 = vld [vmem:[%s352 + $0xc] sm:$0xf]
        %v357 = vld [vmem:[%s352 + $0x10] sm:$0xf]
        %v358 = vld [vmem:[%s352 + $0x14] sm:$0xf]
        %v359 = vld [vmem:[%s352 + $0x18] sm:$0xf]
        %v360 = vld [vmem:[%s352 + $0x1c] sm:$0xf]
        %v361 = vld [vmem:[%s352 + $0x20] sm:$0xf]
        %v362 = vld [vmem:[%s352 + $0x24] sm:$0xf]
        %v363 = vld [vmem:[%s352 + $0x28] sm:$0xf]
        %v364 = vld [vmem:[%s352 + $0x2c] sm:$0xf]
        %v365 = vld [vmem:[%s352 + $0x30] sm:$0xf]
        %v366 = vld [vmem:[%s352 + $0x34] sm:$0xf]
        %v367 = vld [vmem:[%s352 + $0x38] sm:$0xf]
        %v368 = vld [vmem:[%s352 + $0x3c] sm:$0xf]
        %v369 = vld [vmem:[%s352 + $0x40] sm:$0xf]
        %v370 = vld [vmem:[%s352 + $0x44] sm:$0xf]
        %v371 = vld [vmem:[%s352 + $0x48] sm:$0xf]
        %v372 = vld [vmem:[%s352 + $0x4c] sm:$0xf]
        %v373 = vld [vmem:[%s352 + $0x50] sm:$0xf]
        %v374 = vld [vmem:[%s352 + $0x54] sm:$0xf]
        %v375 = vld [vmem:[%s352 + $0x58] sm:$0xf]
        %v376 = vld [vmem:[%s352 + $0x5c] sm:$0xf]
        %v377 = vld [vmem:[%s352 + $0x60] sm:$0xf]
        %v378 = vld [vmem:[%s352 + $0x64] sm:$0xf]
        %v379 = vld [vmem:[%s352 + $0x68] sm:$0xf]
        %v380 = vld [vmem:[%s352 + $0x6c] sm:$0xf]
        %v381 = vld [vmem:[%s352 + $0x70] sm:$0xf]
        %v382 = vld [vmem:[%s352 + $0x74] sm:$0xf]
        %v383 = vld [vmem:[%s352 + $0x78] sm:$0xf]
        %v384 = vld [vmem:[%s352 + $0x7c] sm:$0xf]
        %s385 = scalar_lea.vmem [#allocation5], 64
        %v386 = vld [vmem:[%s385] sm:$0xf]
        %v387 = vld [vmem:[%s385 + $0x4] sm:$0xf]
        %v388 = vld [vmem:[%s385 + $0x8] sm:$0xf]
        %v389 = vld [vmem:[%s385 + $0xc] sm:$0xf]
        %v390 = vld [vmem:[%s385 + $0x10] sm:$0xf]
        %v391 = vld [vmem:[%s385 + $0x14] sm:$0xf]
        %v392 = vld [vmem:[%s385 + $0x18] sm:$0xf]
        %v393 = vld [vmem:[%s385 + $0x1c] sm:$0xf]
        %v394 = vld [vmem:[%s385 + $0x20] sm:$0xf]
        %v395 = vld [vmem:[%s385 + $0x24] sm:$0xf]
        %v396 = vld [vmem:[%s385 + $0x28] sm:$0xf]
        %v397 = vld [vmem:[%s385 + $0x2c] sm:$0xf]
        %v398 = vld [vmem:[%s385 + $0x30] sm:$0xf]
        %v399 = vld [vmem:[%s385 + $0x34] sm:$0xf]
        %v400 = vld [vmem:[%s385 + $0x38] sm:$0xf]
        %v401 = vld [vmem:[%s385 + $0x3c] sm:$0xf]
        %v434 = vunpack.c.l.b16 %v353
        %v435 = vunpack.c.l.b16 %v354
        %v436 = vunpack.c.l.b16 %v355
        %v437 = vunpack.c.l.b16 %v356
        %v438 = vunpack.c.l.b16 %v357
        %v439 = vunpack.c.l.b16 %v358
        %v440 = vunpack.c.l.b16 %v359
        %v441 = vunpack.c.l.b16 %v360
        %v442 = vunpack.c.l.b16 %v361
        %v443 = vunpack.c.l.b16 %v362
        %v444 = vunpack.c.l.b16 %v363
        %v445 = vunpack.c.l.b16 %v364
        %v446 = vunpack.c.l.b16 %v365
        %v447 = vunpack.c.l.b16 %v366
        %v448 = vunpack.c.l.b16 %v367
        %v449 = vunpack.c.l.b16 %v368
        %v450 = vunpack.c.l.b16 %v369
        %v451 = vunpack.c.l.b16 %v370
        %v452 = vunpack.c.l.b16 %v371
        %v453 = vunpack.c.l.b16 %v372
        %v454 = vunpack.c.l.b16 %v373
        %v455 = vunpack.c.l.b16 %v374
        %v456 = vunpack.c.l.b16 %v375
        %v457 = vunpack.c.l.b16 %v376
        %v458 = vunpack.c.l.b16 %v377
        %v459 = vunpack.c.l.b16 %v378
        %v460 = vunpack.c.l.b16 %v379
        %v461 = vunpack.c.l.b16 %v380
        %v462 = vunpack.c.l.b16 %v381
        %v463 = vunpack.c.l.b16 %v382
        %v464 = vunpack.c.l.b16 %v383
        %v465 = vunpack.c.l.b16 %v384
        %v466 = vpack.c.b16 %v435, %v434
        %v467 = vpack.c.b16 %v437, %v436
        %v468 = vpack.c.b16 %v439, %v438
        %v469 = vpack.c.b16 %v441, %v440
        %v470 = vpack.c.b16 %v443, %v442
        %v471 = vpack.c.b16 %v445, %v444
        %v472 = vpack.c.b16 %v447, %v446
        %v473 = vpack.c.b16 %v449, %v448
        %v474 = vpack.c.b16 %v451, %v450
        %v475 = vpack.c.b16 %v453, %v452
        %v476 = vpack.c.b16 %v455, %v454
        %v477 = vpack.c.b16 %v457, %v456
        %v478 = vpack.c.b16 %v459, %v458
        %v479 = vpack.c.b16 %v461, %v460
        %v480 = vpack.c.b16 %v463, %v462
        %v481 = vpack.c.b16 %v465, %v464
        %v514 = vunpack.c.l.b16 %v386
        %v515 = vunpack.c.l.b16 %v387
        %v516 = vunpack.c.l.b16 %v388
        %v517 = vunpack.c.l.b16 %v389
        %v518 = vunpack.c.l.b16 %v390
        %v519 = vunpack.c.l.b16 %v391
        %v520 = vunpack.c.l.b16 %v392
        %v521 = vunpack.c.l.b16 %v393
        %v522 = vunpack.c.l.b16 %v394
        %v523 = vunpack.c.l.b16 %v395
        %v524 = vunpack.c.l.b16 %v396
        %v525 = vunpack.c.l.b16 %v397
        %v526 = vunpack.c.l.b16 %v398
        %v527 = vunpack.c.l.b16 %v399
        %v528 = vunpack.c.l.b16 %v400
        %v529 = vunpack.c.l.b16 %v401
        %v530 = vpack.c.b16 %v515, %v514
        %v531 = vpack.c.b16 %v517, %v516
        %v532 = vpack.c.b16 %v519, %v518
        %v533 = vpack.c.b16 %v521, %v520
        %v534 = vpack.c.b16 %v523, %v522
        %v535 = vpack.c.b16 %v525, %v524
        %v536 = vpack.c.b16 %v527, %v526
        %v537 = vpack.c.b16 %v529, %v528
        %546 = vmatpush.bf16.msra.mxu0 %v537
        %547 = vmatpush.bf16.msra.mxu0 %v536
        %548 = vmatpush.bf16.msra.mxu0 %v535
        %549 = vmatpush.bf16.msra.mxu0 %v534
        %550 = vmatpush.bf16.msra.mxu0 %v533
        %551 = vmatpush.bf16.msra.mxu0 %v532
        %552 = vmatpush.bf16.msra.mxu0 %v531
        %553 = vmatpush.bf16.msra.mxu0 %v530
        %554 = vmatmul.bf16.gmra.mxu0 %v466
        %v555 = vpop.f32.mrf.mxu0
        %v556 = vadd.f32 0.0, %v555
        %v557 = vpop.f32.mrf.mxu0
        %v558 = vadd.f32 0.0, %v557
        %559 = vmatmul.bf16.gmra.mxu0 %v467
        %v560 = vpop.f32.mrf.mxu0
        %v561 = vadd.f32 0.0, %v560
        %v562 = vpop.f32.mrf.mxu0
        %v563 = vadd.f32 0.0, %v562
        %564 = vmatmul.bf16.gmra.mxu0 %v468
        %v565 = vpop.f32.mrf.mxu0
        %v566 = vadd.f32 0.0, %v565
        %v567 = vpop.f32.mrf.mxu0
        %v568 = vadd.f32 0.0, %v567
        %569 = vmatmul.bf16.gmra.mxu0 %v469
        %v570 = vpop.f32.mrf.mxu0
        %v571 = vadd.f32 0.0, %v570
        %v572 = vpop.f32.mrf.mxu0
        %v573 = vadd.f32 0.0, %v572
        %574 = vmatmul.bf16.gmra.mxu0 %v470
        %v575 = vpop.f32.mrf.mxu0
        %v576 = vadd.f32 0.0, %v575
        %v577 = vpop.f32.mrf.mxu0
        %v578 = vadd.f32 0.0, %v577
        %579 = vmatmul.bf16.gmra.mxu0 %v471
        %v580 = vpop.f32.mrf.mxu0
        %v581 = vadd.f32 0.0, %v580
        %v582 = vpop.f32.mrf.mxu0
        %v583 = vadd.f32 0.0, %v582
        %584 = vmatmul.bf16.gmra.mxu0 %v472
        %v585 = vpop.f32.mrf.mxu0
        %v586 = vadd.f32 0.0, %v585
        %v587 = vpop.f32.mrf.mxu0
        %v588 = vadd.f32 0.0, %v587
        %589 = vmatmul.bf16.gmra.mxu0 %v473
        %v590 = vpop.f32.mrf.mxu0
        %v591 = vadd.f32 0.0, %v590
        %v592 = vpop.f32.mrf.mxu0
        %v593 = vadd.f32 0.0, %v592
        %594 = vmatmul.bf16.gmra.mxu0 %v474
        %v595 = vpop.f32.mrf.mxu0
        %v596 = vadd.f32 0.0, %v595
        %v597 = vpop.f32.mrf.mxu0
        %v598 = vadd.f32 0.0, %v597
        %599 = vmatmul.bf16.gmra.mxu0 %v475
        %v600 = vpop.f32.mrf.mxu0
        %v601 = vadd.f32 0.0, %v600
        %v602 = vpop.f32.mrf.mxu0
        %v603 = vadd.f32 0.0, %v602
        %604 = vmatmul.bf16.gmra.mxu0 %v476
        %v605 = vpop.f32.mrf.mxu0
        %v606 = vadd.f32 0.0, %v605
        %v607 = vpop.f32.mrf.mxu0
        %v608 = vadd.f32 0.0, %v607
        %609 = vmatmul.bf16.gmra.mxu0 %v477
        %v610 = vpop.f32.mrf.mxu0
        %v611 = vadd.f32 0.0, %v610
        %v612 = vpop.f32.mrf.mxu0
        %v613 = vadd.f32 0.0, %v612
        %614 = vmatmul.bf16.gmra.mxu0 %v478
        %v615 = vpop.f32.mrf.mxu0
        %v616 = vadd.f32 0.0, %v615
        %v617 = vpop.f32.mrf.mxu0
        %v618 = vadd.f32 0.0, %v617
        %619 = vmatmul.bf16.gmra.mxu0 %v479
        %v620 = vpop.f32.mrf.mxu0
        %v621 = vadd.f32 0.0, %v620
        %v622 = vpop.f32.mrf.mxu0
        %v623 = vadd.f32 0.0, %v622
        %624 = vmatmul.bf16.gmra.mxu0 %v480
        %v625 = vpop.f32.mrf.mxu0
        %v626 = vadd.f32 0.0, %v625
        %v627 = vpop.f32.mrf.mxu0
        %v628 = vadd.f32 0.0, %v627
        %629 = vmatmul.bf16.gmra.mxu0 %v481
        %v630 = vpop.f32.mrf.mxu0
        %v631 = vadd.f32 0.0, %v630
        %v632 = vpop.f32.mrf.mxu0
        %v633 = vadd.f32 0.0, %v632
        %634 = vdwg.mxu0
        %v667 = vunpack.c.l.b16 %v304
        %v668 = vunpack.c.l.b16 %v305
        %v669 = vunpack.c.l.b16 %v306
        %v670 = vunpack.c.l.b16 %v307
        %v671 = vunpack.c.l.b16 %v308
        %v672 = vunpack.c.l.b16 %v309
        %v673 = vunpack.c.l.b16 %v310
        %v674 = vunpack.c.l.b16 %v311
        %v675 = vunpack.c.l.b16 %v312
        %v676 = vunpack.c.l.b16 %v313
        %v677 = vunpack.c.l.b16 %v314
        %v678 = vunpack.c.l.b16 %v315
        %v679 = vunpack.c.l.b16 %v316
        %v680 = vunpack.c.l.b16 %v317
        %v681 = vunpack.c.l.b16 %v318
        %v682 = vunpack.c.l.b16 %v319
        %v683 = vunpack.c.l.b16 %v320
        %v684 = vunpack.c.l.b16 %v321
        %v685 = vunpack.c.l.b16 %v322
        %v686 = vunpack.c.l.b16 %v323
        %v687 = vunpack.c.l.b16 %v324
        %v688 = vunpack.c.l.b16 %v325
        %v689 = vunpack.c.l.b16 %v326
        %v690 = vunpack.c.l.b16 %v327
        %v691 = vunpack.c.l.b16 %v328
        %v692 = vunpack.c.l.b16 %v329
        %v693 = vunpack.c.l.b16 %v330
        %v694 = vunpack.c.l.b16 %v331
        %v695 = vunpack.c.l.b16 %v332
        %v696 = vunpack.c.l.b16 %v333
        %v697 = vunpack.c.l.b16 %v334
        %v698 = vunpack.c.l.b16 %v335
        %v699 = vpack.c.b16 %v668, %v667
        %v700 = vpack.c.b16 %v670, %v669
        %v701 = vpack.c.b16 %v672, %v671
        %v702 = vpack.c.b16 %v674, %v673
        %v703 = vpack.c.b16 %v676, %v675
        %v704 = vpack.c.b16 %v678, %v677
        %v705 = vpack.c.b16 %v680, %v679
        %v706 = vpack.c.b16 %v682, %v681
        %v707 = vpack.c.b16 %v684, %v683
        %v708 = vpack.c.b16 %v686, %v685
        %v709 = vpack.c.b16 %v688, %v687
        %v710 = vpack.c.b16 %v690, %v689
        %v711 = vpack.c.b16 %v692, %v691
        %v712 = vpack.c.b16 %v694, %v693
        %v713 = vpack.c.b16 %v696, %v695
        %v714 = vpack.c.b16 %v698, %v697
        %v747 = vunpack.c.l.b16 %v336
        %v748 = vunpack.c.l.b16 %v337
        %v749 = vunpack.c.l.b16 %v338
        %v750 = vunpack.c.l.b16 %v339
        %v751 = vunpack.c.l.b16 %v340
        %v752 = vunpack.c.l.b16 %v341
        %v753 = vunpack.c.l.b16 %v342
        %v754 = vunpack.c.l.b16 %v343
        %v755 = vunpack.c.l.b16 %v344
        %v756 = vunpack.c.l.b16 %v345
        %v757 = vunpack.c.l.b16 %v346
        %v758 = vunpack.c.l.b16 %v347
        %v759 = vunpack.c.l.b16 %v348
        %v760 = vunpack.c.l.b16 %v349
        %v761 = vunpack.c.l.b16 %v350
        %v762 = vunpack.c.l.b16 %v351
        %v763 = vpack.c.b16 %v748, %v747
        %v764 = vpack.c.b16 %v750, %v749
        %v765 = vpack.c.b16 %v752, %v751
        %v766 = vpack.c.b16 %v754, %v753
        %v767 = vpack.c.b16 %v756, %v755
        %v768 = vpack.c.b16 %v758, %v757
        %v769 = vpack.c.b16 %v760, %v759
        %v770 = vpack.c.b16 %v762, %v761
        %779 = vmatpush.bf16.msra.mxu0 %v770
        %780 = vmatpush.bf16.msra.mxu0 %v769
        %781 = vmatpush.bf16.msra.mxu0 %v768
        %782 = vmatpush.bf16.msra.mxu0 %v767
        %783 = vmatpush.bf16.msra.mxu0 %v766
        %784 = vmatpush.bf16.msra.mxu0 %v765
        %785 = vmatpush.bf16.msra.mxu0 %v764
        %786 = vmatpush.bf16.msra.mxu0 %v763
        %787 = vmatmul.bf16.gmra.mxu0 %v699
        %v788 = vpop.f32.mrf.mxu0
        %v789 = vadd.f32 %v556, %v788
        %v790 = vpop.f32.mrf.mxu0
        %v791 = vadd.f32 %v558, %v790
        %792 = vmatmul.bf16.gmra.mxu0 %v700
        %v793 = vpop.f32.mrf.mxu0
        %v794 = vadd.f32 %v561, %v793
        %v795 = vpop.f32.mrf.mxu0
        %v796 = vadd.f32 %v563, %v795
        %797 = vmatmul.bf16.gmra.mxu0 %v701
        %v798 = vpop.f32.mrf.mxu0
        %v799 = vadd.f32 %v566, %v798
        %v800 = vpop.f32.mrf.mxu0
        %v801 = vadd.f32 %v568, %v800
        %802 = vmatmul.bf16.gmra.mxu0 %v702
        %v803 = vpop.f32.mrf.mxu0
        %v804 = vadd.f32 %v571, %v803
        %v805 = vpop.f32.mrf.mxu0
        %v806 = vadd.f32 %v573, %v805
        %807 = vmatmul.bf16.gmra.mxu0 %v703
        %v808 = vpop.f32.mrf.mxu0
        %v809 = vadd.f32 %v576, %v808
        %v810 = vpop.f32.mrf.mxu0
        %v811 = vadd.f32 %v578, %v810
        %812 = vmatmul.bf16.gmra.mxu0 %v704
        %v813 = vpop.f32.mrf.mxu0
        %v814 = vadd.f32 %v581, %v813
        %v815 = vpop.f32.mrf.mxu0
        %v816 = vadd.f32 %v583, %v815
        %817 = vmatmul.bf16.gmra.mxu0 %v705
        %v818 = vpop.f32.mrf.mxu0
        %v819 = vadd.f32 %v586, %v818
        %v820 = vpop.f32.mrf.mxu0
        %v821 = vadd.f32 %v588, %v820
        %822 = vmatmul.bf16.gmra.mxu0 %v706
        %v823 = vpop.f32.mrf.mxu0
        %v824 = vadd.f32 %v591, %v823
        %v825 = vpop.f32.mrf.mxu0
        %v826 = vadd.f32 %v593, %v825
        %827 = vmatmul.bf16.gmra.mxu0 %v707
        %v828 = vpop.f32.mrf.mxu0
        %v829 = vadd.f32 %v596, %v828
        %v830 = vpop.f32.mrf.mxu0
        %v831 = vadd.f32 %v598, %v830
        %832 = vmatmul.bf16.gmra.mxu0 %v708
        %v833 = vpop.f32.mrf.mxu0
        %v834 = vadd.f32 %v601, %v833
        %v835 = vpop.f32.mrf.mxu0
        %v836 = vadd.f32 %v603, %v835
        %837 = vmatmul.bf16.gmra.mxu0 %v709
        %v838 = vpop.f32.mrf.mxu0
        %v839 = vadd.f32 %v606, %v838
        %v840 = vpop.f32.mrf.mxu0
        %v841 = vadd.f32 %v608, %v840
        %842 = vmatmul.bf16.gmra.mxu0 %v710
        %v843 = vpop.f32.mrf.mxu0
        %v844 = vadd.f32 %v611, %v843
        %v845 = vpop.f32.mrf.mxu0
        %v846 = vadd.f32 %v613, %v845
        %847 = vmatmul.bf16.gmra.mxu0 %v711
        %v848 = vpop.f32.mrf.mxu0
        %v849 = vadd.f32 %v616, %v848
        %v850 = vpop.f32.mrf.mxu0
        %v851 = vadd.f32 %v618, %v850
        %852 = vmatmul.bf16.gmra.mxu0 %v712
        %v853 = vpop.f32.mrf.mxu0
        %v854 = vadd.f32 %v621, %v853
        %v855 = vpop.f32.mrf.mxu0
        %v856 = vadd.f32 %v623, %v855
        %857 = vmatmul.bf16.gmra.mxu0 %v713
        %v858 = vpop.f32.mrf.mxu0
        %v859 = vadd.f32 %v626, %v858
        %v860 = vpop.f32.mrf.mxu0
        %v861 = vadd.f32 %v628, %v860
        %862 = vmatmul.bf16.gmra.mxu0 %v714
        %v863 = vpop.f32.mrf.mxu0
        %v864 = vadd.f32 %v631, %v863
        %v865 = vpop.f32.mrf.mxu0
        %v866 = vadd.f32 %v633, %v865
        %867 = vdwg.mxu0
        %s868 = scalar_lea.vmem %s265, 16 [#allocation2]
        %v869 = vld [vmem:[%s868] sm:$0xf]
        %v870 = vld [vmem:[%s868 + $0x4] sm:$0xf]
        %v871 = vld [vmem:[%s868 + $0x8] sm:$0xf]
        %v872 = vld [vmem:[%s868 + $0xc] sm:$0xf]
        %v873 = vld [vmem:[%s868 + $0x10] sm:$0xf]
        %v874 = vld [vmem:[%s868 + $0x14] sm:$0xf]
        %v875 = vld [vmem:[%s868 + $0x18] sm:$0xf]
        %v876 = vld [vmem:[%s868 + $0x1c] sm:$0xf]
        %v877 = vld [vmem:[%s868 + $0x20] sm:$0xf]
        %v878 = vld [vmem:[%s868 + $0x24] sm:$0xf]
        %v879 = vld [vmem:[%s868 + $0x28] sm:$0xf]
        %v880 = vld [vmem:[%s868 + $0x2c] sm:$0xf]
        %v881 = vld [vmem:[%s868 + $0x30] sm:$0xf]
        %v882 = vld [vmem:[%s868 + $0x34] sm:$0xf]
        %v883 = vld [vmem:[%s868 + $0x38] sm:$0xf]
        %v884 = vld [vmem:[%s868 + $0x3c] sm:$0xf]
        %v885 = vld [vmem:[%s868 + $0x40] sm:$0xf]
        %v886 = vld [vmem:[%s868 + $0x44] sm:$0xf]
        %v887 = vld [vmem:[%s868 + $0x48] sm:$0xf]
        %v888 = vld [vmem:[%s868 + $0x4c] sm:$0xf]
        %v889 = vld [vmem:[%s868 + $0x50] sm:$0xf]
        %v890 = vld [vmem:[%s868 + $0x54] sm:$0xf]
        %v891 = vld [vmem:[%s868 + $0x58] sm:$0xf]
        %v892 = vld [vmem:[%s868 + $0x5c] sm:$0xf]
        %v893 = vld [vmem:[%s868 + $0x60] sm:$0xf]
        %v894 = vld [vmem:[%s868 + $0x64] sm:$0xf]
        %v895 = vld [vmem:[%s868 + $0x68] sm:$0xf]
        %v896 = vld [vmem:[%s868 + $0x6c] sm:$0xf]
        %v897 = vld [vmem:[%s868 + $0x70] sm:$0xf]
        %v898 = vld [vmem:[%s868 + $0x74] sm:$0xf]
        %v899 = vld [vmem:[%s868 + $0x78] sm:$0xf]
        %v900 = vld [vmem:[%s868 + $0x7c] sm:$0xf]
        %s901 = scalar_lea.vmem [#allocation5], 128
        %v902 = vld [vmem:[%s901] sm:$0xf]
        %v903 = vld [vmem:[%s901 + $0x4] sm:$0xf]
        %v904 = vld [vmem:[%s901 + $0x8] sm:$0xf]
        %v905 = vld [vmem:[%s901 + $0xc] sm:$0xf]
        %v906 = vld [vmem:[%s901 + $0x10] sm:$0xf]
        %v907 = vld [vmem:[%s901 + $0x14] sm:$0xf]
        %v908 = vld [vmem:[%s901 + $0x18] sm:$0xf]
        %v909 = vld [vmem:[%s901 + $0x1c] sm:$0xf]
        %v910 = vld [vmem:[%s901 + $0x20] sm:$0xf]
        %v911 = vld [vmem:[%s901 + $0x24] sm:$0xf]
        %v912 = vld [vmem:[%s901 + $0x28] sm:$0xf]
        %v913 = vld [vmem:[%s901 + $0x2c] sm:$0xf]
        %v914 = vld [vmem:[%s901 + $0x30] sm:$0xf]
        %v915 = vld [vmem:[%s901 + $0x34] sm:$0xf]
        %v916 = vld [vmem:[%s901 + $0x38] sm:$0xf]
        %v917 = vld [vmem:[%s901 + $0x3c] sm:$0xf]
        %v950 = vunpack.c.l.b16 %v869
        %v951 = vunpack.c.l.b16 %v870
        %v952 = vunpack.c.l.b16 %v871
        %v953 = vunpack.c.l.b16 %v872
        %v954 = vunpack.c.l.b16 %v873
        %v955 = vunpack.c.l.b16 %v874
        %v956 = vunpack.c.l.b16 %v875
        %v957 = vunpack.c.l.b16 %v876
        %v958 = vunpack.c.l.b16 %v877
        %v959 = vunpack.c.l.b16 %v878
        %v960 = vunpack.c.l.b16 %v879
        %v961 = vunpack.c.l.b16 %v880
        %v962 = vunpack.c.l.b16 %v881
        %v963 = vunpack.c.l.b16 %v882
        %v964 = vunpack.c.l.b16 %v883
        %v965 = vunpack.c.l.b16 %v884
        %v966 = vunpack.c.l.b16 %v885
        %v967 = vunpack.c.l.b16 %v886
        %v968 = vunpack.c.l.b16 %v887
        %v969 = vunpack.c.l.b16 %v888
        %v970 = vunpack.c.l.b16 %v889
        %v971 = vunpack.c.l.b16 %v890
        %v972 = vunpack.c.l.b16 %v891
        %v973 = vunpack.c.l.b16 %v892
        %v974 = vunpack.c.l.b16 %v893
        %v975 = vunpack.c.l.b16 %v894
        %v976 = vunpack.c.l.b16 %v895
        %v977 = vunpack.c.l.b16 %v896
        %v978 = vunpack.c.l.b16 %v897
        %v979 = vunpack.c.l.b16 %v898
        %v980 = vunpack.c.l.b16 %v899
        %v981 = vunpack.c.l.b16 %v900
        %v982 = vpack.c.b16 %v951, %v950
        %v983 = vpack.c.b16 %v953, %v952
        %v984 = vpack.c.b16 %v955, %v954
        %v985 = vpack.c.b16 %v957, %v956
        %v986 = vpack.c.b16 %v959, %v958
        %v987 = vpack.c.b16 %v961, %v960
        %v988 = vpack.c.b16 %v963, %v962
        %v989 = vpack.c.b16 %v965, %v964
        %v990 = vpack.c.b16 %v967, %v966
        %v991 = vpack.c.b16 %v969, %v968
        %v992 = vpack.c.b16 %v971, %v970
        %v993 = vpack.c.b16 %v973, %v972
        %v994 = vpack.c.b16 %v975, %v974
        %v995 = vpack.c.b16 %v977, %v976
        %v996 = vpack.c.b16 %v979, %v978
        %v997 = vpack.c.b16 %v981, %v980
        %v1030 = vunpack.c.l.b16 %v902
        %v1031 = vunpack.c.l.b16 %v903
        %v1032 = vunpack.c.l.b16 %v904
        %v1033 = vunpack.c.l.b16 %v905
        %v1034 = vunpack.c.l.b16 %v906
        %v1035 = vunpack.c.l.b16 %v907
        %v1036 = vunpack.c.l.b16 %v908
        %v1037 = vunpack.c.l.b16 %v909
        %v1038 = vunpack.c.l.b16 %v910
        %v1039 = vunpack.c.l.b16 %v911
        %v1040 = vunpack.c.l.b16 %v912
        %v1041 = vunpack.c.l.b16 %v913
        %v1042 = vunpack.c.l.b16 %v914
        %v1043 = vunpack.c.l.b16 %v915
        %v1044 = vunpack.c.l.b16 %v916
        %v1045 = vunpack.c.l.b16 %v917
        %v1046 = vpack.c.b16 %v1031, %v1030
        %v1047 = vpack.c.b16 %v1033, %v1032
        %v1048 = vpack.c.b16 %v1035, %v1034
        %v1049 = vpack.c.b16 %v1037, %v1036
        %v1050 = vpack.c.b16 %v1039, %v1038
        %v1051 = vpack.c.b16 %v1041, %v1040
        %v1052 = vpack.c.b16 %v1043, %v1042
        %v1053 = vpack.c.b16 %v1045, %v1044
        %1062 = vmatpush.bf16.msra.mxu0 %v1053
        %1063 = vmatpush.bf16.msra.mxu0 %v1052
        %1064 = vmatpush.bf16.msra.mxu0 %v1051
        %1065 = vmatpush.bf16.msra.mxu0 %v1050
        %1066 = vmatpush.bf16.msra.mxu0 %v1049
        %1067 = vmatpush.bf16.msra.mxu0 %v1048
        %1068 = vmatpush.bf16.msra.mxu0 %v1047
        %1069 = vmatpush.bf16.msra.mxu0 %v1046
        %1070 = vmatmul.bf16.gmra.mxu0 %v982
        %v1071 = vpop.f32.mrf.mxu0
        %v1072 = vadd.f32 0.0, %v1071
        %v1073 = vpop.f32.mrf.mxu0
        %v1074 = vadd.f32 0.0, %v1073
        %1075 = vmatmul.bf16.gmra.mxu0 %v983
        %v1076 = vpop.f32.mrf.mxu0
        %v1077 = vadd.f32 0.0, %v1076
        %v1078 = vpop.f32.mrf.mxu0
        %v1079 = vadd.f32 0.0, %v1078
        %1080 = vmatmul.bf16.gmra.mxu0 %v984
        %v1081 = vpop.f32.mrf.mxu0
        %v1082 = vadd.f32 0.0, %v1081
        %v1083 = vpop.f32.mrf.mxu0
        %v1084 = vadd.f32 0.0, %v1083
        %1085 = vmatmul.bf16.gmra.mxu0 %v985
        %v1086 = vpop.f32.mrf.mxu0
        %v1087 = vadd.f32 0.0, %v1086
        %v1088 = vpop.f32.mrf.mxu0
        %v1089 = vadd.f32 0.0, %v1088
        %1090 = vmatmul.bf16.gmra.mxu0 %v986
        %v1091 = vpop.f32.mrf.mxu0
        %v1092 = vadd.f32 0.0, %v1091
        %v1093 = vpop.f32.mrf.mxu0
        %v1094 = vadd.f32 0.0, %v1093
        %1095 = vmatmul.bf16.gmra.mxu0 %v987
        %v1096 = vpop.f32.mrf.mxu0
        %v1097 = vadd.f32 0.0, %v1096
        %v1098 = vpop.f32.mrf.mxu0
        %v1099 = vadd.f32 0.0, %v1098
        %1100 = vmatmul.bf16.gmra.mxu0 %v988
        %v1101 = vpop.f32.mrf.mxu0
        %v1102 = vadd.f32 0.0, %v1101
        %v1103 = vpop.f32.mrf.mxu0
        %v1104 = vadd.f32 0.0, %v1103
        %1105 = vmatmul.bf16.gmra.mxu0 %v989
        %v1106 = vpop.f32.mrf.mxu0
        %v1107 = vadd.f32 0.0, %v1106
        %v1108 = vpop.f32.mrf.mxu0
        %v1109 = vadd.f32 0.0, %v1108
        %1110 = vmatmul.bf16.gmra.mxu0 %v990
        %v1111 = vpop.f32.mrf.mxu0
        %v1112 = vadd.f32 0.0, %v1111
        %v1113 = vpop.f32.mrf.mxu0
        %v1114 = vadd.f32 0.0, %v1113
        %1115 = vmatmul.bf16.gmra.mxu0 %v991
        %v1116 = vpop.f32.mrf.mxu0
        %v1117 = vadd.f32 0.0, %v1116
        %v1118 = vpop.f32.mrf.mxu0
        %v1119 = vadd.f32 0.0, %v1118
        %1120 = vmatmul.bf16.gmra.mxu0 %v992
        %v1121 = vpop.f32.mrf.mxu0
        %v1122 = vadd.f32 0.0, %v1121
        %v1123 = vpop.f32.mrf.mxu0
        %v1124 = vadd.f32 0.0, %v1123
        %1125 = vmatmul.bf16.gmra.mxu0 %v993
        %v1126 = vpop.f32.mrf.mxu0
        %v1127 = vadd.f32 0.0, %v1126
        %v1128 = vpop.f32.mrf.mxu0
        %v1129 = vadd.f32 0.0, %v1128
        %1130 = vmatmul.bf16.gmra.mxu0 %v994
        %v1131 = vpop.f32.mrf.mxu0
        %v1132 = vadd.f32 0.0, %v1131
        %v1133 = vpop.f32.mrf.mxu0
        %v1134 = vadd.f32 0.0, %v1133
        %1135 = vmatmul.bf16.gmra.mxu0 %v995
        %v1136 = vpop.f32.mrf.mxu0
        %v1137 = vadd.f32 0.0, %v1136
        %v1138 = vpop.f32.mrf.mxu0
        %v1139 = vadd.f32 0.0, %v1138
        %1140 = vmatmul.bf16.gmra.mxu0 %v996
        %v1141 = vpop.f32.mrf.mxu0
        %v1142 = vadd.f32 0.0, %v1141
        %v1143 = vpop.f32.mrf.mxu0
        %v1144 = vadd.f32 0.0, %v1143
        %1145 = vmatmul.bf16.gmra.mxu0 %v997
        %v1146 = vpop.f32.mrf.mxu0
        %v1147 = vadd.f32 0.0, %v1146
        %v1148 = vpop.f32.mrf.mxu0
        %v1149 = vadd.f32 0.0, %v1148
        %1150 = vdwg.mxu0
        %v1151 = vadd.f32 %v789, %v1072
        %v1152 = vadd.f32 %v791, %v1074
        %v1153 = vadd.f32 %v794, %v1077
        %v1154 = vadd.f32 %v796, %v1079
        %v1155 = vadd.f32 %v799, %v1082
        %v1156 = vadd.f32 %v801, %v1084
        %v1157 = vadd.f32 %v804, %v1087
        %v1158 = vadd.f32 %v806, %v1089
        %v1159 = vadd.f32 %v809, %v1092
        %v1160 = vadd.f32 %v811, %v1094
        %v1161 = vadd.f32 %v814, %v1097
        %v1162 = vadd.f32 %v816, %v1099
        %v1163 = vadd.f32 %v819, %v1102
        %v1164 = vadd.f32 %v821, %v1104
        %v1165 = vadd.f32 %v824, %v1107
        %v1166 = vadd.f32 %v826, %v1109
        %v1167 = vadd.f32 %v829, %v1112
        %v1168 = vadd.f32 %v831, %v1114
        %v1169 = vadd.f32 %v834, %v1117
        %v1170 = vadd.f32 %v836, %v1119
        %v1171 = vadd.f32 %v839, %v1122
        %v1172 = vadd.f32 %v841, %v1124
        %v1173 = vadd.f32 %v844, %v1127
        %v1174 = vadd.f32 %v846, %v1129
        %v1175 = vadd.f32 %v849, %v1132
        %v1176 = vadd.f32 %v851, %v1134
        %v1177 = vadd.f32 %v854, %v1137
        %v1178 = vadd.f32 %v856, %v1139
        %v1179 = vadd.f32 %v859, %v1142
        %v1180 = vadd.f32 %v861, %v1144
        %v1181 = vadd.f32 %v864, %v1147
        %v1182 = vadd.f32 %v866, %v1149
        %v1183 = vld [vmem:[%s2] sm:$0x1]
        %v1185 = vperm.slane %v1183, 0
        %v1187 = vmul.f32 %v1151, %v1185
        %v1188 = vmul.f32 %v1152, %v1185
        %v1189 = vmul.f32 %v1153, %v1185
        %v1190 = vmul.f32 %v1154, %v1185
        %v1191 = vmul.f32 %v1155, %v1185
        %v1192 = vmul.f32 %v1156, %v1185
        %v1193 = vmul.f32 %v1157, %v1185
        %v1194 = vmul.f32 %v1158, %v1185
        %v1195 = vmul.f32 %v1159, %v1185
        %v1196 = vmul.f32 %v1160, %v1185
        %v1197 = vmul.f32 %v1161, %v1185
        %v1198 = vmul.f32 %v1162, %v1185
        %v1199 = vmul.f32 %v1163, %v1185
        %v1200 = vmul.f32 %v1164, %v1185
        %v1201 = vmul.f32 %v1165, %v1185
        %v1202 = vmul.f32 %v1166, %v1185
        %v1203 = vmul.f32 %v1167, %v1185
        %v1204 = vmul.f32 %v1168, %v1185
        %v1205 = vmul.f32 %v1169, %v1185
        %v1206 = vmul.f32 %v1170, %v1185
        %v1207 = vmul.f32 %v1171, %v1185
        %v1208 = vmul.f32 %v1172, %v1185
        %v1209 = vmul.f32 %v1173, %v1185
        %v1210 = vmul.f32 %v1174, %v1185
        %v1211 = vmul.f32 %v1175, %v1185
        %v1212 = vmul.f32 %v1176, %v1185
        %v1213 = vmul.f32 %v1177, %v1185
        %v1214 = vmul.f32 %v1178, %v1185
        %v1215 = vmul.f32 %v1179, %v1185
        %v1216 = vmul.f32 %v1180, %v1185
        %v1217 = vmul.f32 %v1181, %v1185
        %v1218 = vmul.f32 %v1182, %v1185
        %v1219 = vld [vmem:[%s3] sm:$0x1]
        %v1221 = vperm.slane %v1219, 0
        %v1223 = vadd.f32 %v1187, %v1221
        %v1224 = vadd.f32 %v1188, %v1221
        %v1225 = vadd.f32 %v1189, %v1221
        %v1226 = vadd.f32 %v1190, %v1221
        %v1227 = vadd.f32 %v1191, %v1221
        %v1228 = vadd.f32 %v1192, %v1221
        %v1229 = vadd.f32 %v1193, %v1221
        %v1230 = vadd.f32 %v1194, %v1221
        %v1231 = vadd.f32 %v1195, %v1221
        %v1232 = vadd.f32 %v1196, %v1221
        %v1233 = vadd.f32 %v1197, %v1221
        %v1234 = vadd.f32 %v1198, %v1221
        %v1235 = vadd.f32 %v1199, %v1221
        %v1236 = vadd.f32 %v1200, %v1221
        %v1237 = vadd.f32 %v1201, %v1221
        %v1238 = vadd.f32 %v1202, %v1221
        %v1239 = vadd.f32 %v1203, %v1221
        %v1240 = vadd.f32 %v1204, %v1221
        %v1241 = vadd.f32 %v1205, %v1221
        %v1242 = vadd.f32 %v1206, %v1221
        %v1243 = vadd.f32 %v1207, %v1221
        %v1244 = vadd.f32 %v1208, %v1221
        %v1245 = vadd.f32 %v1209, %v1221
        %v1246 = vadd.f32 %v1210, %v1221
        %v1247 = vadd.f32 %v1211, %v1221
        %v1248 = vadd.f32 %v1212, %v1221
        %v1249 = vadd.f32 %v1213, %v1221
        %v1250 = vadd.f32 %v1214, %v1221
        %v1251 = vadd.f32 %v1215, %v1221
        %v1252 = vadd.f32 %v1216, %v1221
        %v1253 = vadd.f32 %v1217, %v1221
        %v1254 = vadd.f32 %v1218, %v1221
        %v1255 = vunpack.c.l.bf16 %v353
        %v1256 = vunpack.c.l.bf16 %v354
        %v1257 = vunpack.c.l.bf16 %v355
        %v1258 = vunpack.c.l.bf16 %v356
        %v1259 = vunpack.c.l.bf16 %v357
        %v1260 = vunpack.c.l.bf16 %v358
        %v1261 = vunpack.c.l.bf16 %v359
        %v1262 = vunpack.c.l.bf16 %v360
        %v1263 = vunpack.c.l.bf16 %v361
        %v1264 = vunpack.c.l.bf16 %v362
        %v1265 = vunpack.c.l.bf16 %v363
        %v1266 = vunpack.c.l.bf16 %v364
        %v1267 = vunpack.c.l.bf16 %v365
        %v1268 = vunpack.c.l.bf16 %v366
        %v1269 = vunpack.c.l.bf16 %v367
        %v1270 = vunpack.c.l.bf16 %v368
        %v1271 = vunpack.c.l.bf16 %v369
        %v1272 = vunpack.c.l.bf16 %v370
        %v1273 = vunpack.c.l.bf16 %v371
        %v1274 = vunpack.c.l.bf16 %v372
        %v1275 = vunpack.c.l.bf16 %v373
        %v1276 = vunpack.c.l.bf16 %v374
        %v1277 = vunpack.c.l.bf16 %v375
        %v1278 = vunpack.c.l.bf16 %v376
        %v1279 = vunpack.c.l.bf16 %v377
        %v1280 = vunpack.c.l.bf16 %v378
        %v1281 = vunpack.c.l.bf16 %v379
        %v1282 = vunpack.c.l.bf16 %v380
        %v1283 = vunpack.c.l.bf16 %v381
        %v1284 = vunpack.c.l.bf16 %v382
        %v1285 = vunpack.c.l.bf16 %v383
        %v1286 = vunpack.c.l.bf16 %v384
        %v1287 = vadd.f32 %v1223, %v1255
        %v1288 = vadd.f32 %v1224, %v1256
        %v1289 = vadd.f32 %v1225, %v1257
        %v1290 = vadd.f32 %v1226, %v1258
        %v1291 = vadd.f32 %v1227, %v1259
        %v1292 = vadd.f32 %v1228, %v1260
        %v1293 = vadd.f32 %v1229, %v1261
        %v1294 = vadd.f32 %v1230, %v1262
        %v1295 = vadd.f32 %v1231, %v1263
        %v1296 = vadd.f32 %v1232, %v1264
        %v1297 = vadd.f32 %v1233, %v1265
        %v1298 = vadd.f32 %v1234, %v1266
        %v1299 = vadd.f32 %v1235, %v1267
        %v1300 = vadd.f32 %v1236, %v1268
        %v1301 = vadd.f32 %v1237, %v1269
        %v1302 = vadd.f32 %v1238, %v1270
        %v1303 = vadd.f32 %v1239, %v1271
        %v1304 = vadd.f32 %v1240, %v1272
        %v1305 = vadd.f32 %v1241, %v1273
        %v1306 = vadd.f32 %v1242, %v1274
        %v1307 = vadd.f32 %v1243, %v1275
        %v1308 = vadd.f32 %v1244, %v1276
        %v1309 = vadd.f32 %v1245, %v1277
        %v1310 = vadd.f32 %v1246, %v1278
        %v1311 = vadd.f32 %v1247, %v1279
        %v1312 = vadd.f32 %v1248, %v1280
        %v1313 = vadd.f32 %v1249, %v1281
        %v1314 = vadd.f32 %v1250, %v1282
        %v1315 = vadd.f32 %v1251, %v1283
        %v1316 = vadd.f32 %v1252, %v1284
        %v1317 = vadd.f32 %v1253, %v1285
        %v1318 = vadd.f32 %v1254, %v1286
        %v1319 = vmax.f32 %v1287, 0.0
        %v1320 = vmax.f32 %v1288, 0.0
        %v1321 = vmax.f32 %v1289, 0.0
        %v1322 = vmax.f32 %v1290, 0.0
        %v1323 = vmax.f32 %v1291, 0.0
        %v1324 = vmax.f32 %v1292, 0.0
        %v1325 = vmax.f32 %v1293, 0.0
        %v1326 = vmax.f32 %v1294, 0.0
        %v1327 = vmax.f32 %v1295, 0.0
        %v1328 = vmax.f32 %v1296, 0.0
        %v1329 = vmax.f32 %v1297, 0.0
        %v1330 = vmax.f32 %v1298, 0.0
        %v1331 = vmax.f32 %v1299, 0.0
        %v1332 = vmax.f32 %v1300, 0.0
        %v1333 = vmax.f32 %v1301, 0.0
        %v1334 = vmax.f32 %v1302, 0.0
        %v1335 = vmax.f32 %v1303, 0.0
        %v1336 = vmax.f32 %v1304, 0.0
        %v1337 = vmax.f32 %v1305, 0.0
        %v1338 = vmax.f32 %v1306, 0.0
        %v1339 = vmax.f32 %v1307, 0.0
        %v1340 = vmax.f32 %v1308, 0.0
        %v1341 = vmax.f32 %v1309, 0.0
        %v1342 = vmax.f32 %v1310, 0.0
        %v1343 = vmax.f32 %v1311, 0.0
        %v1344 = vmax.f32 %v1312, 0.0
        %v1345 = vmax.f32 %v1313, 0.0
        %v1346 = vmax.f32 %v1314, 0.0
        %v1347 = vmax.f32 %v1315, 0.0
        %v1348 = vmax.f32 %v1316, 0.0
        %v1349 = vmax.f32 %v1317, 0.0
        %v1350 = vmax.f32 %v1318, 0.0
        %v1351 = vadd.f32 %v1319, %v1320
        %v1352 = vadd.f32 %v1351, %v1321
        %v1353 = vadd.f32 %v1352, %v1322
        %v1354 = vadd.f32 %v1353, %v1323
        %v1355 = vadd.f32 %v1354, %v1324
        %v1356 = vadd.f32 %v1355, %v1325
        %v1357 = vadd.f32 %v1356, %v1326
        %v1358 = vadd.f32 %v1357, %v1327
        %v1359 = vadd.f32 %v1358, %v1328
        %v1360 = vadd.f32 %v1359, %v1329
        %v1361 = vadd.f32 %v1360, %v1330
        %v1362 = vadd.f32 %v1361, %v1331
        %v1363 = vadd.f32 %v1362, %v1332
        %v1364 = vadd.f32 %v1363, %v1333
        %v1365 = vadd.f32 %v1364, %v1334
        %v1366 = vadd.f32 %v1365, %v1335
        %v1367 = vadd.f32 %v1366, %v1336
        %v1368 = vadd.f32 %v1367, %v1337
        %v1369 = vadd.f32 %v1368, %v1338
        %v1370 = vadd.f32 %v1369, %v1339
        %v1371 = vadd.f32 %v1370, %v1340
        %v1372 = vadd.f32 %v1371, %v1341
        %v1373 = vadd.f32 %v1372, %v1342
        %v1374 = vadd.f32 %v1373, %v1343
        %v1375 = vadd.f32 %v1374, %v1344
        %v1376 = vadd.f32 %v1375, %v1345
        %v1377 = vadd.f32 %v1376, %v1346
        %v1378 = vadd.f32 %v1377, %v1347
        %v1379 = vadd.f32 %v1378, %v1348
        %v1380 = vadd.f32 %v1379, %v1349
        %v1381 = vadd.f32 %v1380, %v1350
        %v1382 = vrot.slane %v1381, 4
        %v1383 = vadd.f32 %v1381, %v1382
        %v1384 = vrot.slane %v1383, 2
        %v1385 = vadd.f32 %v1383, %v1384
        %v1386 = vrot.slane %v1385, 1
        %v1387 = vadd.f32 %v1385, %v1386
        %v1388 = vmul.f32 %v1387, 0.00390625
        %v1389 = vpack.c.bf16 %v1388, %v1388
        %v1390 = vld [vmem:[#allocation7] sm:$0xf]
        %v1391 = vld [vmem:[#allocation7 + $0x4] sm:$0xf]
        %v1392 = vld [vmem:[#allocation7 + $0x8] sm:$0xf]
        %v1393 = vld [vmem:[#allocation7 + $0xc] sm:$0xf]
        %v1394 = vld [vmem:[#allocation7 + $0x10] sm:$0xf]
        %v1395 = vld [vmem:[#allocation7 + $0x14] sm:$0xf]
        %v1396 = vld [vmem:[#allocation7 + $0x18] sm:$0xf]
        %v1397 = vld [vmem:[#allocation7 + $0x1c] sm:$0xf]
        %v1398 = vld [vmem:[#allocation7 + $0x20] sm:$0xf]
        %v1399 = vld [vmem:[#allocation7 + $0x24] sm:$0xf]
        %v1400 = vld [vmem:[#allocation7 + $0x28] sm:$0xf]
        %v1401 = vld [vmem:[#allocation7 + $0x2c] sm:$0xf]
        %v1402 = vld [vmem:[#allocation7 + $0x30] sm:$0xf]
        %v1403 = vld [vmem:[#allocation7 + $0x34] sm:$0xf]
        %v1404 = vld [vmem:[#allocation7 + $0x38] sm:$0xf]
        %v1405 = vld [vmem:[#allocation7 + $0x3c] sm:$0xf]
        %v1406 = vld [vmem:[%s5] sm:$0x1]
        %v1423 = vunpack.c.l.b16 %v1390
        %v1424 = vunpack.c.l.b16 %v1391
        %v1425 = vunpack.c.l.b16 %v1392
        %v1426 = vunpack.c.l.b16 %v1393
        %v1427 = vunpack.c.l.b16 %v1394
        %v1428 = vunpack.c.l.b16 %v1395
        %v1429 = vunpack.c.l.b16 %v1396
        %v1430 = vunpack.c.l.b16 %v1397
        %v1431 = vunpack.c.l.b16 %v1398
        %v1432 = vunpack.c.l.b16 %v1399
        %v1433 = vunpack.c.l.b16 %v1400
        %v1434 = vunpack.c.l.b16 %v1401
        %v1435 = vunpack.c.l.b16 %v1402
        %v1436 = vunpack.c.l.b16 %v1403
        %v1437 = vunpack.c.l.b16 %v1404
        %v1438 = vunpack.c.l.b16 %v1405
        %v1439 = vpack.c.b16 %v1424, %v1423
        %v1440 = vpack.c.b16 %v1426, %v1425
        %v1441 = vpack.c.b16 %v1428, %v1427
        %v1442 = vpack.c.b16 %v1430, %v1429
        %v1443 = vpack.c.b16 %v1432, %v1431
        %v1444 = vpack.c.b16 %v1434, %v1433
        %v1445 = vpack.c.b16 %v1436, %v1435
        %v1446 = vpack.c.b16 %v1438, %v1437
        %1455 = vmatpush.bf16.msra.mxu0 %v1446
        %1456 = vmatpush.bf16.msra.mxu0 %v1445
        %1457 = vmatpush.bf16.msra.mxu0 %v1444
        %1458 = vmatpush.bf16.msra.mxu0 %v1443
        %1459 = vmatpush.bf16.msra.mxu0 %v1442
        %1460 = vmatpush.bf16.msra.mxu0 %v1441
        %1461 = vmatpush.bf16.msra.mxu0 %v1440
        %1462 = vmatpush.bf16.msra.mxu0 %v1439
        %1463 = vmatmul.bf16.gmra.mxu0 %v1389
        %v1464 = vpop.f32.mrf.mxu0
        %v1465 = vadd.f32 %v1406, %v1464
        %v1466 = vpop.f32.mrf.mxu0
        %1467 = vdwg.mxu0
        %1468 = vst [vmem:[%s303] sm:$0x1] %v1465
        %s1469 = sand.u32 %s163, 1
        %s1470 = scalar_lea.sflag [#allocation4], %s1469
        %s1471 = sand.u32 %s163, 1
        %s1472 = scalar_lea.vmem [#allocation8], %s1471
        // Predicated region
        $region57: #{tpu_custom_call.1} parent=43 // pred_check
          %p1473 = pneg %p173
        $region58: #{tpu_custom_call.1} parent=43 // pred_check_branch
          %1475 = sbr.rel (%p1473) target = $region60
        $region59: #{tpu_custom_call.1} parent=43 // pred_region
          %1477 = vsyncadd %s1470, 0
          %s1478 = scalar_lea.hbm %s6, %s24
          %s1480 = sshll.u32 %s1472, 4
          %s1481 = int_to_ptr.vmem [resolvable:$true] %s1480
          %s1482 = sshll.u32 %s1478, 4
          %s1483 = int_to_ptr.hbm [resolvable:$true] %s1482
          %1485 = dma.vmem_to_hbm [thread:$0]  %s1481, 16, %s1483, %s1470
        $region60: #{tpu_custom_call.1} parent=43 // pred_fallthru
          _
      $region44: #{tpu_custom_call.1} parent=5 // pred_fallthru
        _
      %p1486 = scmp.le.s32.totalorder 2, %s19
      // Predicated region
      $region61: #{tpu_custom_call.1} parent=5 // pred_check
        %p1487 = pneg %p1486
      $region62: #{tpu_custom_call.1} parent=5 // pred_check_branch
        %1489 = sbr.rel (%p1487) target = $region64
      $region63: #{tpu_custom_call.1} parent=5 // pred_region
        %s1490 = ssub.s32 %s19, 2
        // Predicated region
        $region65: #{tpu_custom_call.1} parent=63 // pred_check
          %p1491 = pneg %p179
        $region66: #{tpu_custom_call.1} parent=63 // pred_check_branch
          %1493 = sbr.rel (%p1491) target = $region68
        $region67: #{tpu_custom_call.1} parent=63 // pred_region
          %s1494 = sand.u32 %s164, 1
          %s1495 = scalar_lea.sflag [#allocation4], %s1494
          %s1496 = sand.u32 %s164, 1
          %s1497 = scalar_lea.vmem [#allocation8], %s1496
          %1499 = dma.done %s1495, 16
        $region68: #{tpu_custom_call.1} parent=63 // pred_fallthru
          _
      $region64: #{tpu_custom_call.1} parent=5 // pred_fallthru
        _
    $region6: #{tpu_custom_call.1} parent=1 // loop_footer
      %s23 = sadd.s32 1, %s19
    $region7: #{tpu_custom_call.1} parent=1 // loop_footer_branch
      %18 = sbr.rel target = $region3
    $region8: #{tpu_custom_call.1} parent=1 // loop_exit
      _
    %1500 = vsyncpa [#allocation3], 1
    %s1501 = scalar_lea.sflag [#allocation3], 1
    %1502 = vsyncpa %s1501, 1
    %1503 = vsyncpa [#allocation6], 1
    %1504 = vsyncpa [#allocation4], 1
    %s1505 = scalar_lea.sflag [#allocation4], 1
    %1506 = vsyncpa %s1505, 1

</llo_original>
